<compile_context>
chip_gen: v7x
topology: tpu7x:2x2x1
jax: 0.10.0
libtpu: 0.0.40
codegen_flags: <defaults>
</compile_context>

<pallas_src>
import functools
import math

import numpy as np
import jax
import jax.numpy as jnp
from jax import lax
from jax.experimental import pallas as pl
from jax.experimental.pallas import tpu as pltpu

_LANE = 128
# Per-output-tile VMEM budget; output is double-buffered => 2x in flight,
# which stays under the smallest scoped-VMEM default (v5e: 16 MiB).
_MAX_TILE_BYTES = 6 * 1024 * 1024
# Tables at least this large get >= 2 grid blocks so dimension_semantics
# ("parallel",) can shard rows across v7x's two TensorCores.
_MIN_SPLIT_BYTES = 256 * 1024
# Widest lane-dense row we are willing to emit (64 vregs per row).
_MAX_FLAT_LANES = 8192


def _cdiv(a, b):
    return -(-a // b)


def _round_up(x, m):
    return _cdiv(x, m) * m


def _pe_kernel(coef_ref, o_ref):
    """o[r, c] = sin(global_row(r) * coef[0, c] + coef[1, c]).

    One multiply, one add and one transcendental per element; everything
    column-dependent lives in the resident (2, C) coefficient block.
    """
    rows = o_ref.shape[0]
    row0 = pl.program_id(0) * rows
    scale = coef_ref[0:1, :]                                    # (1, C)
    offset = coef_ref[1:2, :]                                   # (1, C)
    r = (lax.broadcasted_iota(jnp.int32, (rows, 1), 0) + row0).astype(jnp.float32)
    o_ref[...] = jnp.sin(r * scale + offset).astype(o_ref.dtype)


@functools.lru_cache(maxsize=16)
def _pe_table(max_len, d_model, dtype_name):
    """Build the (1, >=max_len, d_model) positional table once per key."""
    dtype = np.dtype(dtype_name)
    itemsize = dtype.itemsize

    # ---- stored layout -------------------------------------------------
    # If d_model is not a multiple of 128, flatten the table row-major and
    # emit it as (rows, lcm(d_model, 128)) so stores are lane-dense.
    if d_model % _LANE == 0:
        lanes = d_model
    else:
        lanes = math.lcm(d_model, _LANE)
        if lanes > _MAX_FLAT_LANES:
            lanes = d_model            # fall back to full-dim (masked) stores
    rows_per_super = lanes // d_model
    padded_len = _round_up(max_len, rows_per_super)
    total_rows = padded_len // rows_per_super

    # ---- host-side (2, lanes) coefficients (float64 -> float32) ---------
    c = np.arange(lanes, dtype=np.int64)
    col = c % d_model
    pos_off = (c // d_model).astype(np.float64)
    pair = (col // 2).astype(np.float64)
    inv_freq = np.exp(pair * (-2.0 * math.log(10000.0) / d_model))
    phase = (col % 2).astype(np.float64) * (math.pi / 2.0)
    coef = np.stack([rows_per_super * inv_freq,
                     pos_off * inv_freq + phase]).astype(np.float32)
    coef = jnp.asarray(coef)                                    # (2, lanes)

    # ---- row tiling ------------------------------------------------------
    granule = 8 if itemsize >= 4 else 16        # packed bf16 vregs are (16,128)
    row_bytes = lanes * itemsize
    budget_rows = max(granule, (_MAX_TILE_BYTES // row_bytes) // granule * granule)
    min_blocks = 2 if total_rows * row_bytes >= _MIN_SPLIT_BYTES else 1
    n_blocks = max(min_blocks, _cdiv(total_rows, budget_rows))
    ts = _round_up(_cdiv(total_rows, n_blocks), granule)
    grid = _cdiv(total_rows, ts)
    rows_kernel = grid * ts                      # only a few rows of padding

    n_elems = rows_kernel * lanes
    pe = pl.pallas_call(
        _pe_kernel,
        out_shape=jax.ShapeDtypeStruct((rows_kernel, lanes), dtype),
        grid=(grid,),
        in_specs=[pl.BlockSpec((2, lanes), lambda i: (0, 0))],
        out_specs=pl.BlockSpec((ts, lanes), lambda i: (i, 0)),
        compiler_params=pltpu.CompilerParams(
            dimension_semantics=("parallel",)),
        cost_estimate=pl.CostEstimate(
            flops=2 * n_elems,
            transcendentals=n_elems,
            bytes_accessed=n_elems * itemsize + coef.size * 4),
    )(coef)

    # Row-major reshape back to (positions, d_model).  Padded positions past
    # max_len are valid sinusoid rows; they are never returned by the slice.
    pe = pe.reshape(-1, d_model)
    return pe[None]


def positional_embedding(x, max_len=512, dtype=jnp.float32):
    """Pallas equivalent of PositionalEmbedding(d_model, max_len).forward(x)."""
    seq_len = int(x.shape[1])
    d_model = int(x.shape[2])
    assert d_model % 2 == 0, "d_model must be even (PyTorch module assumes this)"
    assert seq_len <= max_len, "sequence length exceeds max_len"
    table = _pe_table(int(max_len), d_model, np.dtype(dtype).name)
    return table[:, :seq_len]


def _reference(seq_len, d_model):
    # Pure-JAX reference reproducing the PyTorch buffer construction.
    position = jnp.arange(seq_len, dtype=jnp.float32)[:, None]
    div_term = jnp.exp(
        jnp.arange(0, d_model, 2, dtype=jnp.float32)
        * (-math.log(10000.0) / d_model)
    )
    pe = jnp.zeros((seq_len, d_model), dtype=jnp.float32)
    pe = pe.at[:, 0::2].set(jnp.sin(position * div_term))
    pe = pe.at[:, 1::2].set(jnp.cos(position * div_term))
    return pe[None]


if __name__ == "__main__":
    key = jax.random.PRNGKey(0)

    # (batch, seq, d_model, max_len, atol) — exercise each layout / grid path.
    configs = [
        (2, 8, 32, 512, 2e-5),       # lane-dense, lanes=128 (d_model | 128)
        (2, 16, 128, 512, 2e-5),     # standard lanes=d_model, 2 grid blocks
        (2, 8, 20, 512, 2e-5),       # lane-dense, lanes=lcm(20,128)=640
        (1, 16, 160, 512, 2e-5),     # lane-dense with d_model > 128 (lanes=640)
        (1, 1040, 128, 2048, 3e-4),  # multi-tile grid, long table, sliced
    ]
    for batch, seq, d_model, max_len, atol in configs:
        x = jax.random.normal(key, (batch, seq, d_model), dtype=jnp.float32)
        out = jax.block_until_ready(positional_embedding(x, max_len=max_len))
        ref = _reference(seq, d_model)
        assert out.shape == (1, seq, d_model), (out.shape, (1, seq, d_model))
        assert out.dtype == jnp.float32, out.dtype
        assert jnp.allclose(out, ref, atol=atol, rtol=1e-5), (
            f"mismatch vs reference for seq={seq}, d_model={d_model}")

    print("KERNEL_OK")
</pallas_src>

<mosaic_0001>
module attributes {stable_mosaic.version = 11 : i64} {
  func.func @_pe_kernel(%arg0: i32, %arg1: memref<2x128xf32, #tpu.memory_space<vmem>>, %arg2: memref<128x128xf32, #tpu.memory_space<vmem>>) attributes {dimension_semantics = [#tpu.dimension_semantics<parallel>], iteration_bounds = array<i64: 1>, scalar_prefetch = 0 : i64, scratch_operands = 0 : i64, tpu.core_type = #tpu.core_type<tc>, window_params = [{pipeline_mode = #tpu.pipeline_mode<synchronous>, transform_indices = @transform_0, window_bounds = array<i64: 2, 128>}, {transform_indices = @transform_1, window_bounds = array<i64: 128, 128>}]} {
    %c128_i32 = arith.constant 128 : i32
    %0 = arith.muli %arg0, %c128_i32 : i32
    %c0 = arith.constant 0 : index
    %c0_0 = arith.constant 0 : index
    %1 = vector.load %arg1[%c0, %c0_0] : memref<2x128xf32, #tpu.memory_space<vmem>>, vector<1x128xf32>
    %c1 = arith.constant 1 : index
    %c0_1 = arith.constant 0 : index
    %2 = vector.load %arg1[%c1, %c0_1] : memref<2x128xf32, #tpu.memory_space<vmem>>, vector<1x128xf32>
    %3 = tpu.iota {dimensions = array<i32: 0>} : vector<128x1xi32>
    %4 = vector.broadcast %0 : i32 to vector<128x1xi32>
    %5 = arith.addi %3, %4 : vector<128x1xi32>
    %6 = arith.sitofp %5 : vector<128x1xi32> to vector<128x1xf32>
    %7 = vector.broadcast %6 : vector<128x1xf32> to vector<128x128xf32>
    %8 = vector.broadcast %1 : vector<1x128xf32> to vector<128x128xf32>
    %9 = arith.mulf %7, %8 : vector<128x128xf32>
    %10 = vector.broadcast %2 : vector<1x128xf32> to vector<128x128xf32>
    %11 = arith.addf %9, %10 : vector<128x128xf32>
    %12 = math.sin %11 : vector<128x128xf32>
    %c0_2 = arith.constant 0 : index
    %c0_3 = arith.constant 0 : index
    %13 = vector.load %arg2[%c0_2, %c0_3] : memref<128x128xf32, #tpu.memory_space<vmem>>, vector<128x128xf32>
    tpu.vector_store %arg2[%c0_2, %c0_3], %12 {strides = array<i32>} : memref<128x128xf32, #tpu.memory_space<vmem>>, vector<128x128xf32>,
    return
  }
  func.func @transform_0(%arg0: i32) -> (i32, i32) {
    %c0_i32 = arith.constant 0 : i32
    %c0_i32_0 = arith.constant 0 : i32
    %c0_i32_1 = arith.constant 0 : i32
    return %c0_i32, %c0_i32_0 : i32, i32
  }
  func.func @transform_1(%arg0: i32) -> (i32, i32) {
    %c0_i32 = arith.constant 0 : i32
    %c0_i32_0 = arith.constant 0 : i32
    return %arg0, %c0_i32 : i32, i32
  }
}

</mosaic_0001>

<llo_original>
// kernel: tpu_custom_call.1
$region0: #{tpu_custom_call.1}
  #allocation0 [shape = 'u32[]', space=smem, size = 0x4, offset = 0x4, fixed_abs, tag = 'smem constant byte address 0x4 - core index']
  #allocation1 [shape = 'u32[144,128]{1,0:T(1,128)}', space=vmem, size = 0x12000, scoped, tag = 'internal scratch']
  %s0 = inlined_call_operand.hbm [shape: f32[2,128], index: 0, kind: input, shape index: {}]
  %s1 = inlined_call_operand.hbm [shape: f32[128,128], index: 1, kind: output, shape index: {}]
  %s2 = sld [smem:[#allocation0]]
  $region18: #{tpu_custom_call.1} parent=0
    _
  %s4 = ssub.s32 1, %s2
  %s5 = scalar_select 0, %s4, %s2
  $region1: #{tpu_custom_call.1} parent=0
    #allocation2 [shape = 'u8[1024]{0}', space=vmem, size = 0x400, scoped, tag = 'input window, operand 0, single buffered']
    #allocation3 [shape = 's32[1]{0}', space=sflag, size = 0x4, scoped, tag = 'scoped memory for tpu_custom_call.1']
    #allocation4 [shape = 's32[1]{0}', space=sflag, size = 0x4, scoped, tag = 'scoped memory for tpu_custom_call.1']
    #allocation5 [shape = 'u8[65536]{0}', space=vmem, size = 0x10000, scoped, tag = 'output window, operand 0, single buffered']
    %6 = vsyncpa [#allocation3], 0
    %7 = vsyncpa [#allocation4], 0
    // Predicated region
    $region2: #{tpu_custom_call.1} parent=1 // pred_check
      _
    $region3: #{tpu_custom_call.1} parent=1 // pred_check_branch
      %9 = sbr.rel (0) target = $region5
    $region4: #{tpu_custom_call.1} parent=1 // pred_region
      %s11 = ssub.s32 32, 32
      %12 = vsyncadd [#allocation3], %s11
      %s14 = sshll.u32 [#allocation2], 4
      %s15 = int_to_ptr.vmem [resolvable:$true] %s14
      %17 = dma.hbm_to_vmem [thread:$0]  %s0, 32, %s15, [#allocation3]
    $region5: #{tpu_custom_call.1} parent=1 // pred_fallthru
      _
    // Predicated region
    $region6: #{tpu_custom_call.1} parent=1 // pred_check
      _
    $region7: #{tpu_custom_call.1} parent=1 // pred_check_branch
      %19 = sbr.rel (0) target = $region9
    $region8: #{tpu_custom_call.1} parent=1 // pred_region
      %20 = dma.done [#allocation3], 32
    $region9: #{tpu_custom_call.1} parent=1 // pred_fallthru
      _
    %s21 = smul.u32 0, 128
    %v22 = vld [vmem:[#allocation2] sm:$0x1]
    %v23 = vld [vmem:[#allocation2 + $0x1] sm:$0x1]
    %v24 = vlaneseq
    %v25 = vshrl.u32 %v24, 7
    %v26 = vadd.s32 %v25, 8
    %v27 = vadd.s32 %v25, 16
    %v28 = vadd.s32 %v25, 24
    %v29 = vadd.s32 %v25, 32
    %v30 = vadd.s32 %v25, 40
    %v31 = vadd.s32 %v25, 48
    %v32 = vadd.s32 %v25, 56
    %v33 = vadd.s32 %v25, 64
    %v34 = vadd.s32 %v25, 72
    %v35 = vadd.s32 %v25, 80
    %v36 = vadd.s32 %v25, 88
    %v37 = vadd.s32 %v25, 96
    %v38 = vadd.s32 %v25, 104
    %v39 = vadd.s32 %v25, 112
    %v40 = vadd.s32 %v25, 120
    %v41 = vstv %s21
    %v42 = vadd.s32 %v25, %v41
    %v43 = vadd.s32 %v26, %v41
    %v44 = vadd.s32 %v27, %v41
    %v45 = vadd.s32 %v28, %v41
    %v46 = vadd.s32 %v29, %v41
    %v47 = vadd.s32 %v30, %v41
    %v48 = vadd.s32 %v31, %v41
    %v49 = vadd.s32 %v32, %v41
    %v50 = vadd.s32 %v33, %v41
    %v51 = vadd.s32 %v34, %v41
    %v52 = vadd.s32 %v35, %v41
    %v53 = vadd.s32 %v36, %v41
    %v54 = vadd.s32 %v37, %v41
    %v55 = vadd.s32 %v38, %v41
    %v56 = vadd.s32 %v39, %v41
    %v57 = vadd.s32 %v40, %v41
    %v58 = vcvt.s32.f32 %v42
    %v59 = vcvt.s32.f32 %v43
    %v60 = vcvt.s32.f32 %v44
    %v61 = vcvt.s32.f32 %v45
    %v62 = vcvt.s32.f32 %v46
    %v63 = vcvt.s32.f32 %v47
    %v64 = vcvt.s32.f32 %v48
    %v65 = vcvt.s32.f32 %v49
    %v66 = vcvt.s32.f32 %v50
    %v67 = vcvt.s32.f32 %v51
    %v68 = vcvt.s32.f32 %v52
    %v69 = vcvt.s32.f32 %v53
    %v70 = vcvt.s32.f32 %v54
    %v71 = vcvt.s32.f32 %v55
    %v72 = vcvt.s32.f32 %v56
    %v73 = vcvt.s32.f32 %v57
    %v74 = vlaneseq
    %v75 = vshrl.u32 %v74, 7
    %v76 = vsub.s32 0, %v75
    %v77 = vrot.slane %v22, %v76
    %v78 = vmul.f32 %v58, %v77
    %v79 = vmul.f32 %v59, %v77
    %v80 = vmul.f32 %v60, %v77
    %v81 = vmul.f32 %v61, %v77
    %v82 = vmul.f32 %v62, %v77
    %v83 = vmul.f32 %v63, %v77
    %v84 = vmul.f32 %v64, %v77
    %v85 = vmul.f32 %v65, %v77
    %v86 = vmul.f32 %v66, %v77
    %v87 = vmul.f32 %v67, %v77
    %v88 = vmul.f32 %v68, %v77
    %v89 = vmul.f32 %v69, %v77
    %v90 = vmul.f32 %v70, %v77
    %v91 = vmul.f32 %v71, %v77
    %v92 = vmul.f32 %v72, %v77
    %v93 = vmul.f32 %v73, %v77
    %v94 = vlaneseq
    %v95 = vshrl.u32 %v94, 7
    %v96 = vsub.s32 0, %v95
    %v97 = vrot.slane %v23, %v96
    %v98 = vadd.f32 %v78, %v97
    %v99 = vadd.f32 %v79, %v97
    %v100 = vadd.f32 %v80, %v97
    %v101 = vadd.f32 %v81, %v97
    %v102 = vadd.f32 %v82, %v97
    %v103 = vadd.f32 %v83, %v97
    %v104 = vadd.f32 %v84, %v97
    %v105 = vadd.f32 %v85, %v97
    %v106 = vadd.f32 %v86, %v97
    %v107 = vadd.f32 %v87, %v97
    %v108 = vadd.f32 %v88, %v97
    %v109 = vadd.f32 %v89, %v97
    %v110 = vadd.f32 %v90, %v97
    %v111 = vadd.f32 %v91, %v97
    %v112 = vadd.f32 %v92, %v97
    %v113 = vadd.f32 %v93, %v97
    %v114 = vand.u32 2147483647, %v98
    %vm115 = vcmp.le.f32.partialorder %v114, 0.7853982
    %vm116 = vcmp.lt.s32.totalorder %v98, 0
    %v117 = vand.u32 %v98, 2139095040
    %v118 = vshrl.u32 %v117, 23
    %v119 = vsub.s32 %v118, 127
    %v120 = vand.u32 2147483647, %v98
    %v121 = vand.u32 %v120, 8388607
    %v122 = vor.u32 %v121, 8388608
    %v123 = vsub.s32 0, %v122
    %v124 = vadd.s32 %v119, 1
    %vm125 = vcmp.gt.s32.totalorder %v124, 0
    %v126 = vsel %vm125, %v124, 0
    %v127 = vshrl.u32 %v126, 5
    %v128 = vand.u32 %v126, 31
    %v129 = vsub.s32 32, %v128
    %v130 = vshrl.u32 683565275, %v129
    %v131 = vshll.u32 683565275, %v128
    %v132 = vshrl.u32 2475754826, %v129
    %v133 = vor.u32 %v131, %v132
    %v134 = vshll.u32 2475754826, %v128
    %v135 = vshrl.u32 2131351028, %v129
    %v136 = vor.u32 %v134, %v135
    %v137 = vshll.u32 2131351028, %v128
    %v138 = vshrl.u32 2102212464, %v129
    %v139 = vor.u32 %v137, %v138
    %v140 = vshll.u32 2102212464, %v128
    %v141 = vshrl.u32 920167782, %v129
    %v142 = vor.u32 %v140, %v141
    %v143 = vshll.u32 920167782, %v128
    %v144 = vshrl.u32 1326507024, %v129
    %v145 = vor.u32 %v143, %v144
    %vm146 = vcmp.lt.s32.totalorder %v127, 1
    %vm147 = vcmp.lt.s32.totalorder %v127, 2
    %vm148 = vcmp.lt.s32.totalorder %v127, 3
    %vm149 = vcmp.lt.s32.totalorder %v127, 4
    %v150 = vsel %vm146, %v130, %v133
    %v151 = vsel %vm149, %v139, 2102212464
    %v152 = vsel %vm148, %v136, %v151
    %v153 = vsel %vm147, %v150, %v152
    %v154 = vsel %vm146, %v133, %v136
    %v155 = vsel %vm149, %v142, 920167782
    %v156 = vsel %vm148, %v139, %v155
    %v157 = vsel %vm147, %v154, %v156
    %v158 = vsel %vm146, %v136, %v139
    %v159 = vsel %vm149, %v145, 1326507024
    %v160 = vsel %vm148, %v142, %v159
    %v161 = vsel %vm147, %v158, %v160
    %v162 = vshll.u32 %v122, 8
    %v163 = vmul.u32.u64.compose %v162, %v161
    %v164 = vextract.low.u32 %v163
    %v165 = vextract.high.u32 %v163
    %v166 = vmul.u32.u64.compose %v162, %v157
    %v167 = vextract.low.u32 %v166
    %v168 = vextract.high.u32 %v166
    %v169 = vmul.u32 %v162, %v153
    %v170 = vadd.s32 %v165, %v167
    %vm171 = vc.u32 %v165, %v167
    %v172 = vadd.s32 %v168, 1
    %v173 = vsel %vm171, %v172, %v168
    %v174 = vadd.s32 %v169, %v173
    %v175 = vadd.s32 %v174, 536870912
    %v176 = vshrl.u32 %v175, 30
    %v177 = vshll.u32 %v176, 30
    %v178 = vsub.s32 %v174, %v177
    %vm179 = vcmp.lt.s32.totalorder %v178, 0
    %v180 = vsub.s32 0, %v178
    %v181 = vsel %vm179, %v180, %v178
    %v182 = vclz %v181
    %v183 = vsub.s32 %v182, 2
    %vm184 = vcmp.gt.s32.totalorder 0, %v183
    %v185 = vsel %vm184, 0, %v183
    %v186 = vsub.s32 32, %v185
    %v187 = vshll.u32 %v178, %v185
    %v188 = vshrl.u32 %v170, %v186
    %v189 = vor.u32 %v187, %v188
    %v190 = vsub.s32 4294967266, %v185
    %v191 = vadd.s32 %v190, 127
    %v192 = vshll.u32 %v191, 23
    %v193 = vor.u32 4788187, %v192
    %v194 = vand.u32 2147483647, %v193
    %v196 = vcvt.s32.f32 %v189
    %v197 = vmul.f32 %v196, %v194
    %v198 = vxor.u32 %v197, 2147483648
    %v199 = vsel %vm116, %v198, %v197
    %v200 = vsub.s32 4, %v176
    %v201 = vsel %vm116, %v200, %v176
    %v202 = vsel %vm115, %v98, %v199
    %v203 = vsel %vm115, 0, %v201
    %v204 = vcosq.f32.pop %v202
    %v205 = vsinq.f32.pop %v202
    %vm206 = vweird.f32 %v98
    %v207 = vadd.s32 %v203, 3
    %v208 = vand.u32 %v207, 3
    %vm209 = vcmp.lt.s32.totalorder %v208, 2
    %vm210 = vcmp.eq.s32.totalorder %v208, 0
    %v211 = vxor.u32 %v205, 2147483648
    %v212 = vsel %vm210, %v204, %v211
    %vm213 = vcmp.eq.s32.totalorder %v208, 2
    %v214 = vxor.u32 %v204, 2147483648
    %v215 = vsel %vm213, %v214, %v205
    %v216 = vsel %vm209, %v212, %v215
    %v217 = vsel %vm206, nan, %v216
    %v218 = vand.u32 2147483647, %v99
    %vm219 = vcmp.le.f32.partialorder %v218, 0.7853982
    %vm220 = vcmp.lt.s32.totalorder %v99, 0
    %v221 = vand.u32 %v99, 2139095040
    %v222 = vshrl.u32 %v221, 23
    %v223 = vsub.s32 %v222, 127
    %v224 = vand.u32 2147483647, %v99
    %v225 = vand.u32 %v224, 8388607
    %v226 = vor.u32 %v225, 8388608
    %v227 = vsub.s32 0, %v226
    %v228 = vadd.s32 %v223, 1
    %vm229 = vcmp.gt.s32.totalorder %v228, 0
    %v230 = vsel %vm229, %v228, 0
    %v231 = vshrl.u32 %v230, 5
    %v232 = vand.u32 %v230, 31
    %v233 = vsub.s32 32, %v232
    %v234 = vshrl.u32 683565275, %v233
    %v235 = vshll.u32 683565275, %v232
    %v236 = vshrl.u32 2475754826, %v233
    %v237 = vor.u32 %v235, %v236
    %v238 = vshll.u32 2475754826, %v232
    %v239 = vshrl.u32 2131351028, %v233
    %v240 = vor.u32 %v238, %v239
    %v241 = vshll.u32 2131351028, %v232
    %v242 = vshrl.u32 2102212464, %v233
    %v243 = vor.u32 %v241, %v242
    %v244 = vshll.u32 2102212464, %v232
    %v245 = vshrl.u32 920167782, %v233
    %v246 = vor.u32 %v244, %v245
    %v247 = vshll.u32 920167782, %v232
    %v248 = vshrl.u32 1326507024, %v233
    %v249 = vor.u32 %v247, %v248
    %vm250 = vcmp.lt.s32.totalorder %v231, 1
    %vm251 = vcmp.lt.s32.totalorder %v231, 2
    %vm252 = vcmp.lt.s32.totalorder %v231, 3
    %vm253 = vcmp.lt.s32.totalorder %v231, 4
    %v254 = vsel %vm250, %v234, %v237
    %v255 = vsel %vm253, %v243, 2102212464
    %v256 = vsel %vm252, %v240, %v255
    %v257 = vsel %vm251, %v254, %v256
    %v258 = vsel %vm250, %v237, %v240
    %v259 = vsel %vm253, %v246, 920167782
    %v260 = vsel %vm252, %v243, %v259
    %v261 = vsel %vm251, %v258, %v260
    %v262 = vsel %vm250, %v240, %v243
    %v263 = vsel %vm253, %v249, 1326507024
    %v264 = vsel %vm252, %v246, %v263
    %v265 = vsel %vm251, %v262, %v264
    %v266 = vshll.u32 %v226, 8
    %v267 = vmul.u32.u64.compose %v266, %v265
    %v268 = vextract.low.u32 %v267
    %v269 = vextract.high.u32 %v267
    %v270 = vmul.u32.u64.compose %v266, %v261
    %v271 = vextract.low.u32 %v270
    %v272 = vextract.high.u32 %v270
    %v273 = vmul.u32 %v266, %v257
    %v274 = vadd.s32 %v269, %v271
    %vm275 = vc.u32 %v269, %v271
    %v276 = vadd.s32 %v272, 1
    %v277 = vsel %vm275, %v276, %v272
    %v278 = vadd.s32 %v273, %v277
    %v279 = vadd.s32 %v278, 536870912
    %v280 = vshrl.u32 %v279, 30
    %v281 = vshll.u32 %v280, 30
    %v282 = vsub.s32 %v278, %v281
    %vm283 = vcmp.lt.s32.totalorder %v282, 0
    %v284 = vsub.s32 0, %v282
    %v285 = vsel %vm283, %v284, %v282
    %v286 = vclz %v285
    %v287 = vsub.s32 %v286, 2
    %vm288 = vcmp.gt.s32.totalorder 0, %v287
    %v289 = vsel %vm288, 0, %v287
    %v290 = vsub.s32 32, %v289
    %v291 = vshll.u32 %v282, %v289
    %v292 = vshrl.u32 %v274, %v290
    %v293 = vor.u32 %v291, %v292
    %v294 = vsub.s32 4294967266, %v289
    %v295 = vadd.s32 %v294, 127
    %v296 = vshll.u32 %v295, 23
    %v297 = vor.u32 4788187, %v296
    %v298 = vand.u32 2147483647, %v297
    %v300 = vcvt.s32.f32 %v293
    %v301 = vmul.f32 %v300, %v298
    %v302 = vxor.u32 %v301, 2147483648
    %v303 = vsel %vm220, %v302, %v301
    %v304 = vsub.s32 4, %v280
    %v305 = vsel %vm220, %v304, %v280
    %v306 = vsel %vm219, %v99, %v303
    %v307 = vsel %vm219, 0, %v305
    %v308 = vcosq.f32.pop %v306
    %v309 = vsinq.f32.pop %v306
    %vm310 = vweird.f32 %v99
    %v311 = vadd.s32 %v307, 3
    %v312 = vand.u32 %v311, 3
    %vm313 = vcmp.lt.s32.totalorder %v312, 2
    %vm314 = vcmp.eq.s32.totalorder %v312, 0
    %v315 = vxor.u32 %v309, 2147483648
    %v316 = vsel %vm314, %v308, %v315
    %vm317 = vcmp.eq.s32.totalorder %v312, 2
    %v318 = vxor.u32 %v308, 2147483648
    %v319 = vsel %vm317, %v318, %v309
    %v320 = vsel %vm313, %v316, %v319
    %v321 = vsel %vm310, nan, %v320
    %v322 = vand.u32 2147483647, %v100
    %vm323 = vcmp.le.f32.partialorder %v322, 0.7853982
    %vm324 = vcmp.lt.s32.totalorder %v100, 0
    %v325 = vand.u32 %v100, 2139095040
    %v326 = vshrl.u32 %v325, 23
    %v327 = vsub.s32 %v326, 127
    %v328 = vand.u32 2147483647, %v100
    %v329 = vand.u32 %v328, 8388607
    %v330 = vor.u32 %v329, 8388608
    %v331 = vsub.s32 0, %v330
    %v332 = vadd.s32 %v327, 1
    %vm333 = vcmp.gt.s32.totalorder %v332, 0
    %v334 = vsel %vm333, %v332, 0
    %v335 = vshrl.u32 %v334, 5
    %v336 = vand.u32 %v334, 31
    %v337 = vsub.s32 32, %v336
    %v338 = vshrl.u32 683565275, %v337
    %v339 = vshll.u32 683565275, %v336
    %v340 = vshrl.u32 2475754826, %v337
    %v341 = vor.u32 %v339, %v340
    %v342 = vshll.u32 2475754826, %v336
    %v343 = vshrl.u32 2131351028, %v337
    %v344 = vor.u32 %v342, %v343
    %v345 = vshll.u32 2131351028, %v336
    %v346 = vshrl.u32 2102212464, %v337
    %v347 = vor.u32 %v345, %v346
    %v348 = vshll.u32 2102212464, %v336
    %v349 = vshrl.u32 920167782, %v337
    %v350 = vor.u32 %v348, %v349
    %v351 = vshll.u32 920167782, %v336
    %v352 = vshrl.u32 1326507024, %v337
    %v353 = vor.u32 %v351, %v352
    %vm354 = vcmp.lt.s32.totalorder %v335, 1
    %vm355 = vcmp.lt.s32.totalorder %v335, 2
    %vm356 = vcmp.lt.s32.totalorder %v335, 3
    %vm357 = vcmp.lt.s32.totalorder %v335, 4
    %v358 = vsel %vm354, %v338, %v341
    %v359 = vsel %vm357, %v347, 2102212464
    %v360 = vsel %vm356, %v344, %v359
    %v361 = vsel %vm355, %v358, %v360
    %v362 = vsel %vm354, %v341, %v344
    %v363 = vsel %vm357, %v350, 920167782
    %v364 = vsel %vm356, %v347, %v363
    %v365 = vsel %vm355, %v362, %v364
    %v366 = vsel %vm354, %v344, %v347
    %v367 = vsel %vm357, %v353, 1326507024
    %v368 = vsel %vm356, %v350, %v367
    %v369 = vsel %vm355, %v366, %v368
    %v370 = vshll.u32 %v330, 8
    %v371 = vmul.u32.u64.compose %v370, %v369
    %v372 = vextract.low.u32 %v371
    %v373 = vextract.high.u32 %v371
    %v374 = vmul.u32.u64.compose %v370, %v365
    %v375 = vextract.low.u32 %v374
    %v376 = vextract.high.u32 %v374
    %v377 = vmul.u32 %v370, %v361
    %v378 = vadd.s32 %v373, %v375
    %vm379 = vc.u32 %v373, %v375
    %v380 = vadd.s32 %v376, 1
    %v381 = vsel %vm379, %v380, %v376
    %v382 = vadd.s32 %v377, %v381
    %v383 = vadd.s32 %v382, 536870912
    %v384 = vshrl.u32 %v383, 30
    %v385 = vshll.u32 %v384, 30
    %v386 = vsub.s32 %v382, %v385
    %vm387 = vcmp.lt.s32.totalorder %v386, 0
    %v388 = vsub.s32 0, %v386
    %v389 = vsel %vm387, %v388, %v386
    %v390 = vclz %v389
    %v391 = vsub.s32 %v390, 2
    %vm392 = vcmp.gt.s32.totalorder 0, %v391
    %v393 = vsel %vm392, 0, %v391
    %v394 = vsub.s32 32, %v393
    %v395 = vshll.u32 %v386, %v393
    %v396 = vshrl.u32 %v378, %v394
    %v397 = vor.u32 %v395, %v396
    %v398 = vsub.s32 4294967266, %v393
    %v399 = vadd.s32 %v398, 127
    %v400 = vshll.u32 %v399, 23
    %v401 = vor.u32 4788187, %v400
    %v402 = vand.u32 2147483647, %v401
    %v404 = vcvt.s32.f32 %v397
    %v405 = vmul.f32 %v404, %v402
    %v406 = vxor.u32 %v405, 2147483648
    %v407 = vsel %vm324, %v406, %v405
    %v408 = vsub.s32 4, %v384
    %v409 = vsel %vm324, %v408, %v384
    %v410 = vsel %vm323, %v100, %v407
    %v411 = vsel %vm323, 0, %v409
    %v412 = vcosq.f32.pop %v410
    %v413 = vsinq.f32.pop %v410
    %vm414 = vweird.f32 %v100
    %v415 = vadd.s32 %v411, 3
    %v416 = vand.u32 %v415, 3
    %vm417 = vcmp.lt.s32.totalorder %v416, 2
    %vm418 = vcmp.eq.s32.totalorder %v416, 0
    %v419 = vxor.u32 %v413, 2147483648
    %v420 = vsel %vm418, %v412, %v419
    %vm421 = vcmp.eq.s32.totalorder %v416, 2
    %v422 = vxor.u32 %v412, 2147483648
    %v423 = vsel %vm421, %v422, %v413
    %v424 = vsel %vm417, %v420, %v423
    %v425 = vsel %vm414, nan, %v424
    %v426 = vand.u32 2147483647, %v101
    %vm427 = vcmp.le.f32.partialorder %v426, 0.7853982
    %vm428 = vcmp.lt.s32.totalorder %v101, 0
    %v429 = vand.u32 %v101, 2139095040
    %v430 = vshrl.u32 %v429, 23
    %v431 = vsub.s32 %v430, 127
    %v432 = vand.u32 2147483647, %v101
    %v433 = vand.u32 %v432, 8388607
    %v434 = vor.u32 %v433, 8388608
    %v435 = vsub.s32 0, %v434
    %v436 = vadd.s32 %v431, 1
    %vm437 = vcmp.gt.s32.totalorder %v436, 0
    %v438 = vsel %vm437, %v436, 0
    %v439 = vshrl.u32 %v438, 5
    %v440 = vand.u32 %v438, 31
    %v441 = vsub.s32 32, %v440
    %v442 = vshrl.u32 683565275, %v441
    %v443 = vshll.u32 683565275, %v440
    %v444 = vshrl.u32 2475754826, %v441
    %v445 = vor.u32 %v443, %v444
    %v446 = vshll.u32 2475754826, %v440
    %v447 = vshrl.u32 2131351028, %v441
    %v448 = vor.u32 %v446, %v447
    %v449 = vshll.u32 2131351028, %v440
    %v450 = vshrl.u32 2102212464, %v441
    %v451 = vor.u32 %v449, %v450
    %v452 = vshll.u32 2102212464, %v440
    %v453 = vshrl.u32 920167782, %v441
    %v454 = vor.u32 %v452, %v453
    %v455 = vshll.u32 920167782, %v440
    %v456 = vshrl.u32 1326507024, %v441
    %v457 = vor.u32 %v455, %v456
    %vm458 = vcmp.lt.s32.totalorder %v439, 1
    %vm459 = vcmp.lt.s32.totalorder %v439, 2
    %vm460 = vcmp.lt.s32.totalorder %v439, 3
    %vm461 = vcmp.lt.s32.totalorder %v439, 4
    %v462 = vsel %vm458, %v442, %v445
    %v463 = vsel %vm461, %v451, 2102212464
    %v464 = vsel %vm460, %v448, %v463
    %v465 = vsel %vm459, %v462, %v464
    %v466 = vsel %vm458, %v445, %v448
    %v467 = vsel %vm461, %v454, 920167782
    %v468 = vsel %vm460, %v451, %v467
    %v469 = vsel %vm459, %v466, %v468
    %v470 = vsel %vm458, %v448, %v451
    %v471 = vsel %vm461, %v457, 1326507024
    %v472 = vsel %vm460, %v454, %v471
    %v473 = vsel %vm459, %v470, %v472
    %v474 = vshll.u32 %v434, 8
    %v475 = vmul.u32.u64.compose %v474, %v473
    %v476 = vextract.low.u32 %v475
    %v477 = vextract.high.u32 %v475
    %v478 = vmul.u32.u64.compose %v474, %v469
    %v479 = vextract.low.u32 %v478
    %v480 = vextract.high.u32 %v478
    %v481 = vmul.u32 %v474, %v465
    %v482 = vadd.s32 %v477, %v479
    %vm483 = vc.u32 %v477, %v479
    %v484 = vadd.s32 %v480, 1
    %v485 = vsel %vm483, %v484, %v480
    %v486 = vadd.s32 %v481, %v485
    %v487 = vadd.s32 %v486, 536870912
    %v488 = vshrl.u32 %v487, 30
    %v489 = vshll.u32 %v488, 30
    %v490 = vsub.s32 %v486, %v489
    %vm491 = vcmp.lt.s32.totalorder %v490, 0
    %v492 = vsub.s32 0, %v490
    %v493 = vsel %vm491, %v492, %v490
    %v494 = vclz %v493
    %v495 = vsub.s32 %v494, 2
    %vm496 = vcmp.gt.s32.totalorder 0, %v495
    %v497 = vsel %vm496, 0, %v495
    %v498 = vsub.s32 32, %v497
    %v499 = vshll.u32 %v490, %v497
    %v500 = vshrl.u32 %v482, %v498
    %v501 = vor.u32 %v499, %v500
    %v502 = vsub.s32 4294967266, %v497
    %v503 = vadd.s32 %v502, 127
    %v504 = vshll.u32 %v503, 23
    %v505 = vor.u32 4788187, %v504
    %v506 = vand.u32 2147483647, %v505
    %v508 = vcvt.s32.f32 %v501
    %v509 = vmul.f32 %v508, %v506
    %v510 = vxor.u32 %v509, 2147483648
    %v511 = vsel %vm428, %v510, %v509
    %v512 = vsub.s32 4, %v488
    %v513 = vsel %vm428, %v512, %v488
    %v514 = vsel %vm427, %v101, %v511
    %v515 = vsel %vm427, 0, %v513
    %v516 = vcosq.f32.pop %v514
    %v517 = vsinq.f32.pop %v514
    %vm518 = vweird.f32 %v101
    %v519 = vadd.s32 %v515, 3
    %v520 = vand.u32 %v519, 3
    %vm521 = vcmp.lt.s32.totalorder %v520, 2
    %vm522 = vcmp.eq.s32.totalorder %v520, 0
    %v523 = vxor.u32 %v517, 2147483648
    %v524 = vsel %vm522, %v516, %v523
    %vm525 = vcmp.eq.s32.totalorder %v520, 2
    %v526 = vxor.u32 %v516, 2147483648
    %v527 = vsel %vm525, %v526, %v517
    %v528 = vsel %vm521, %v524, %v527
    %v529 = vsel %vm518, nan, %v528
    %v530 = vand.u32 2147483647, %v102
    %vm531 = vcmp.le.f32.partialorder %v530, 0.7853982
    %vm532 = vcmp.lt.s32.totalorder %v102, 0
    %v533 = vand.u32 %v102, 2139095040
    %v534 = vshrl.u32 %v533, 23
    %v535 = vsub.s32 %v534, 127
    %v536 = vand.u32 2147483647, %v102
    %v537 = vand.u32 %v536, 8388607
    %v538 = vor.u32 %v537, 8388608
    %v539 = vsub.s32 0, %v538
    %v540 = vadd.s32 %v535, 1
    %vm541 = vcmp.gt.s32.totalorder %v540, 0
    %v542 = vsel %vm541, %v540, 0
    %v543 = vshrl.u32 %v542, 5
    %v544 = vand.u32 %v542, 31
    %v545 = vsub.s32 32, %v544
    %v546 = vshrl.u32 683565275, %v545
    %v547 = vshll.u32 683565275, %v544
    %v548 = vshrl.u32 2475754826, %v545
    %v549 = vor.u32 %v547, %v548
    %v550 = vshll.u32 2475754826, %v544
    %v551 = vshrl.u32 2131351028, %v545
    %v552 = vor.u32 %v550, %v551
    %v553 = vshll.u32 2131351028, %v544
    %v554 = vshrl.u32 2102212464, %v545
    %v555 = vor.u32 %v553, %v554
    %v556 = vshll.u32 2102212464, %v544
    %v557 = vshrl.u32 920167782, %v545
    %v558 = vor.u32 %v556, %v557
    %v559 = vshll.u32 920167782, %v544
    %v560 = vshrl.u32 1326507024, %v545
    %v561 = vor.u32 %v559, %v560
    %vm562 = vcmp.lt.s32.totalorder %v543, 1
    %vm563 = vcmp.lt.s32.totalorder %v543, 2
    %vm564 = vcmp.lt.s32.totalorder %v543, 3
    %vm565 = vcmp.lt.s32.totalorder %v543, 4
    %v566 = vsel %vm562, %v546, %v549
    %v567 = vsel %vm565, %v555, 2102212464
    %v568 = vsel %vm564, %v552, %v567
    %v569 = vsel %vm563, %v566, %v568
    %v570 = vsel %vm562, %v549, %v552
    %v571 = vsel %vm565, %v558, 920167782
    %v572 = vsel %vm564, %v555, %v571
    %v573 = vsel %vm563, %v570, %v572
    %v574 = vsel %vm562, %v552, %v555
    %v575 = vsel %vm565, %v561, 1326507024
    %v576 = vsel %vm564, %v558, %v575
    %v577 = vsel %vm563, %v574, %v576
    %v578 = vshll.u32 %v538, 8
    %v579 = vmul.u32.u64.compose %v578, %v577
    %v580 = vextract.low.u32 %v579
    %v581 = vextract.high.u32 %v579
    %v582 = vmul.u32.u64.compose %v578, %v573
    %v583 = vextract.low.u32 %v582
    %v584 = vextract.high.u32 %v582
    %v585 = vmul.u32 %v578, %v569
    %v586 = vadd.s32 %v581, %v583
    %vm587 = vc.u32 %v581, %v583
    %v588 = vadd.s32 %v584, 1
    %v589 = vsel %vm587, %v588, %v584
    %v590 = vadd.s32 %v585, %v589
    %v591 = vadd.s32 %v590, 536870912
    %v592 = vshrl.u32 %v591, 30
    %v593 = vshll.u32 %v592, 30
    %v594 = vsub.s32 %v590, %v593
    %vm595 = vcmp.lt.s32.totalorder %v594, 0
    %v596 = vsub.s32 0, %v594
    %v597 = vsel %vm595, %v596, %v594
    %v598 = vclz %v597
    %v599 = vsub.s32 %v598, 2
    %vm600 = vcmp.gt.s32.totalorder 0, %v599
    %v601 = vsel %vm600, 0, %v599
    %v602 = vsub.s32 32, %v601
    %v603 = vshll.u32 %v594, %v601
    %v604 = vshrl.u32 %v586, %v602
    %v605 = vor.u32 %v603, %v604
    %v606 = vsub.s32 4294967266, %v601
    %v607 = vadd.s32 %v606, 127
    %v608 = vshll.u32 %v607, 23
    %v609 = vor.u32 4788187, %v608
    %v610 = vand.u32 2147483647, %v609
    %v612 = vcvt.s32.f32 %v605
    %v613 = vmul.f32 %v612, %v610
    %v614 = vxor.u32 %v613, 2147483648
    %v615 = vsel %vm532, %v614, %v613
    %v616 = vsub.s32 4, %v592
    %v617 = vsel %vm532, %v616, %v592
    %v618 = vsel %vm531, %v102, %v615
    %v619 = vsel %vm531, 0, %v617
    %v620 = vcosq.f32.pop %v618
    %v621 = vsinq.f32.pop %v618
    %vm622 = vweird.f32 %v102
    %v623 = vadd.s32 %v619, 3
    %v624 = vand.u32 %v623, 3
    %vm625 = vcmp.lt.s32.totalorder %v624, 2
    %vm626 = vcmp.eq.s32.totalorder %v624, 0
    %v627 = vxor.u32 %v621, 2147483648
    %v628 = vsel %vm626, %v620, %v627
    %vm629 = vcmp.eq.s32.totalorder %v624, 2
    %v630 = vxor.u32 %v620, 2147483648
    %v631 = vsel %vm629, %v630, %v621
    %v632 = vsel %vm625, %v628, %v631
    %v633 = vsel %vm622, nan, %v632
    %v634 = vand.u32 2147483647, %v103
    %vm635 = vcmp.le.f32.partialorder %v634, 0.7853982
    %vm636 = vcmp.lt.s32.totalorder %v103, 0
    %v637 = vand.u32 %v103, 2139095040
    %v638 = vshrl.u32 %v637, 23
    %v639 = vsub.s32 %v638, 127
    %v640 = vand.u32 2147483647, %v103
    %v641 = vand.u32 %v640, 8388607
    %v642 = vor.u32 %v641, 8388608
    %v643 = vsub.s32 0, %v642
    %v644 = vadd.s32 %v639, 1
    %vm645 = vcmp.gt.s32.totalorder %v644, 0
    %v646 = vsel %vm645, %v644, 0
    %v647 = vshrl.u32 %v646, 5
    %v648 = vand.u32 %v646, 31
    %v649 = vsub.s32 32, %v648
    %v650 = vshrl.u32 683565275, %v649
    %v651 = vshll.u32 683565275, %v648
    %v652 = vshrl.u32 2475754826, %v649
    %v653 = vor.u32 %v651, %v652
    %v654 = vshll.u32 2475754826, %v648
    %v655 = vshrl.u32 2131351028, %v649
    %v656 = vor.u32 %v654, %v655
    %v657 = vshll.u32 2131351028, %v648
    %v658 = vshrl.u32 2102212464, %v649
    %v659 = vor.u32 %v657, %v658
    %v660 = vshll.u32 2102212464, %v648
    %v661 = vshrl.u32 920167782, %v649
    %v662 = vor.u32 %v660, %v661
    %v663 = vshll.u32 920167782, %v648
    %v664 = vshrl.u32 1326507024, %v649
    %v665 = vor.u32 %v663, %v664
    %vm666 = vcmp.lt.s32.totalorder %v647, 1
    %vm667 = vcmp.lt.s32.totalorder %v647, 2
    %vm668 = vcmp.lt.s32.totalorder %v647, 3
    %vm669 = vcmp.lt.s32.totalorder %v647, 4
    %v670 = vsel %vm666, %v650, %v653
    %v671 = vsel %vm669, %v659, 2102212464
    %v672 = vsel %vm668, %v656, %v671
    %v673 = vsel %vm667, %v670, %v672
    %v674 = vsel %vm666, %v653, %v656
    %v675 = vsel %vm669, %v662, 920167782
    %v676 = vsel %vm668, %v659, %v675
    %v677 = vsel %vm667, %v674, %v676
    %v678 = vsel %vm666, %v656, %v659
    %v679 = vsel %vm669, %v665, 1326507024
    %v680 = vsel %vm668, %v662, %v679
    %v681 = vsel %vm667, %v678, %v680
    %v682 = vshll.u32 %v642, 8
    %v683 = vmul.u32.u64.compose %v682, %v681
    %v684 = vextract.low.u32 %v683
    %v685 = vextract.high.u32 %v683
    %v686 = vmul.u32.u64.compose %v682, %v677
    %v687 = vextract.low.u32 %v686
    %v688 = vextract.high.u32 %v686
    %v689 = vmul.u32 %v682, %v673
    %v690 = vadd.s32 %v685, %v687
    %vm691 = vc.u32 %v685, %v687
    %v692 = vadd.s32 %v688, 1
    %v693 = vsel %vm691, %v692, %v688
    %v694 = vadd.s32 %v689, %v693
    %v695 = vadd.s32 %v694, 536870912
    %v696 = vshrl.u32 %v695, 30
    %v697 = vshll.u32 %v696, 30
    %v698 = vsub.s32 %v694, %v697
    %vm699 = vcmp.lt.s32.totalorder %v698, 0
    %v700 = vsub.s32 0, %v698
    %v701 = vsel %vm699, %v700, %v698
    %v702 = vclz %v701
    %v703 = vsub.s32 %v702, 2
    %vm704 = vcmp.gt.s32.totalorder 0, %v703
    %v705 = vsel %vm704, 0, %v703
    %v706 = vsub.s32 32, %v705
    %v707 = vshll.u32 %v698, %v705
    %v708 = vshrl.u32 %v690, %v706
    %v709 = vor.u32 %v707, %v708
    %v710 = vsub.s32 4294967266, %v705
    %v711 = vadd.s32 %v710, 127
    %v712 = vshll.u32 %v711, 23
    %v713 = vor.u32 4788187, %v712
    %v714 = vand.u32 2147483647, %v713
    %v716 = vcvt.s32.f32 %v709
    %v717 = vmul.f32 %v716, %v714
    %v718 = vxor.u32 %v717, 2147483648
    %v719 = vsel %vm636, %v718, %v717
    %v720 = vsub.s32 4, %v696
    %v721 = vsel %vm636, %v720, %v696
    %v722 = vsel %vm635, %v103, %v719
    %v723 = vsel %vm635, 0, %v721
    %v724 = vcosq.f32.pop %v722
    %v725 = vsinq.f32.pop %v722
    %vm726 = vweird.f32 %v103
    %v727 = vadd.s32 %v723, 3
    %v728 = vand.u32 %v727, 3
    %vm729 = vcmp.lt.s32.totalorder %v728, 2
    %vm730 = vcmp.eq.s32.totalorder %v728, 0
    %v731 = vxor.u32 %v725, 2147483648
    %v732 = vsel %vm730, %v724, %v731
    %vm733 = vcmp.eq.s32.totalorder %v728, 2
    %v734 = vxor.u32 %v724, 2147483648
    %v735 = vsel %vm733, %v734, %v725
    %v736 = vsel %vm729, %v732, %v735
    %v737 = vsel %vm726, nan, %v736
    %v738 = vand.u32 2147483647, %v104
    %vm739 = vcmp.le.f32.partialorder %v738, 0.7853982
    %vm740 = vcmp.lt.s32.totalorder %v104, 0
    %v741 = vand.u32 %v104, 2139095040
    %v742 = vshrl.u32 %v741, 23
    %v743 = vsub.s32 %v742, 127
    %v744 = vand.u32 2147483647, %v104
    %v745 = vand.u32 %v744, 8388607
    %v746 = vor.u32 %v745, 8388608
    %v747 = vsub.s32 0, %v746
    %v748 = vadd.s32 %v743, 1
    %vm749 = vcmp.gt.s32.totalorder %v748, 0
    %v750 = vsel %vm749, %v748, 0
    %v751 = vshrl.u32 %v750, 5
    %v752 = vand.u32 %v750, 31
    %v753 = vsub.s32 32, %v752
    %v754 = vshrl.u32 683565275, %v753
    %v755 = vshll.u32 683565275, %v752
    %v756 = vshrl.u32 2475754826, %v753
    %v757 = vor.u32 %v755, %v756
    %v758 = vshll.u32 2475754826, %v752
    %v759 = vshrl.u32 2131351028, %v753
    %v760 = vor.u32 %v758, %v759
    %v761 = vshll.u32 2131351028, %v752
    %v762 = vshrl.u32 2102212464, %v753
    %v763 = vor.u32 %v761, %v762
    %v764 = vshll.u32 2102212464, %v752
    %v765 = vshrl.u32 920167782, %v753
    %v766 = vor.u32 %v764, %v765
    %v767 = vshll.u32 920167782, %v752
    %v768 = vshrl.u32 1326507024, %v753
    %v769 = vor.u32 %v767, %v768
    %vm770 = vcmp.lt.s32.totalorder %v751, 1
    %vm771 = vcmp.lt.s32.totalorder %v751, 2
    %vm772 = vcmp.lt.s32.totalorder %v751, 3
    %vm773 = vcmp.lt.s32.totalorder %v751, 4
    %v774 = vsel %vm770, %v754, %v757
    %v775 = vsel %vm773, %v763, 2102212464
    %v776 = vsel %vm772, %v760, %v775
    %v777 = vsel %vm771, %v774, %v776
    %v778 = vsel %vm770, %v757, %v760
    %v779 = vsel %vm773, %v766, 920167782
    %v780 = vsel %vm772, %v763, %v779
    %v781 = vsel %vm771, %v778, %v780
    %v782 = vsel %vm770, %v760, %v763
    %v783 = vsel %vm773, %v769, 1326507024
    %v784 = vsel %vm772, %v766, %v783
    %v785 = vsel %vm771, %v782, %v784
    %v786 = vshll.u32 %v746, 8
    %v787 = vmul.u32.u64.compose %v786, %v785
    %v788 = vextract.low.u32 %v787
    %v789 = vextract.high.u32 %v787
    %v790 = vmul.u32.u64.compose %v786, %v781
    %v791 = vextract.low.u32 %v790
    %v792 = vextract.high.u32 %v790
    %v793 = vmul.u32 %v786, %v777
    %v794 = vadd.s32 %v789, %v791
    %vm795 = vc.u32 %v789, %v791
    %v796 = vadd.s32 %v792, 1
    %v797 = vsel %vm795, %v796, %v792
    %v798 = vadd.s32 %v793, %v797
    %v799 = vadd.s32 %v798, 536870912
    %v800 = vshrl.u32 %v799, 30
    %v801 = vshll.u32 %v800, 30
    %v802 = vsub.s32 %v798, %v801
    %vm803 = vcmp.lt.s32.totalorder %v802, 0
    %v804 = vsub.s32 0, %v802
    %v805 = vsel %vm803, %v804, %v802
    %v806 = vclz %v805
    %v807 = vsub.s32 %v806, 2
    %vm808 = vcmp.gt.s32.totalorder 0, %v807
    %v809 = vsel %vm808, 0, %v807
    %v810 = vsub.s32 32, %v809
    %v811 = vshll.u32 %v802, %v809
    %v812 = vshrl.u32 %v794, %v810
    %v813 = vor.u32 %v811, %v812
    %v814 = vsub.s32 4294967266, %v809
    %v815 = vadd.s32 %v814, 127
    %v816 = vshll.u32 %v815, 23
    %v817 = vor.u32 4788187, %v816
    %v818 = vand.u32 2147483647, %v817
    %v820 = vcvt.s32.f32 %v813
    %v821 = vmul.f32 %v820, %v818
    %v822 = vxor.u32 %v821, 2147483648
    %v823 = vsel %vm740, %v822, %v821
    %v824 = vsub.s32 4, %v800
    %v825 = vsel %vm740, %v824, %v800
    %v826 = vsel %vm739, %v104, %v823
    %v827 = vsel %vm739, 0, %v825
    %v828 = vcosq.f32.pop %v826
    %v829 = vsinq.f32.pop %v826
    %vm830 = vweird.f32 %v104
    %v831 = vadd.s32 %v827, 3
    %v832 = vand.u32 %v831, 3
    %vm833 = vcmp.lt.s32.totalorder %v832, 2
    %vm834 = vcmp.eq.s32.totalorder %v832, 0
    %v835 = vxor.u32 %v829, 2147483648
    %v836 = vsel %vm834, %v828, %v835
    %vm837 = vcmp.eq.s32.totalorder %v832, 2
    %v838 = vxor.u32 %v828, 2147483648
    %v839 = vsel %vm837, %v838, %v829
    %v840 = vsel %vm833, %v836, %v839
    %v841 = vsel %vm830, nan, %v840
    %v842 = vand.u32 2147483647, %v105
    %vm843 = vcmp.le.f32.partialorder %v842, 0.7853982
    %vm844 = vcmp.lt.s32.totalorder %v105, 0
    %v845 = vand.u32 %v105, 2139095040
    %v846 = vshrl.u32 %v845, 23
    %v847 = vsub.s32 %v846, 127
    %v848 = vand.u32 2147483647, %v105
    %v849 = vand.u32 %v848, 8388607
    %v850 = vor.u32 %v849, 8388608
    %v851 = vsub.s32 0, %v850
    %v852 = vadd.s32 %v847, 1
    %vm853 = vcmp.gt.s32.totalorder %v852, 0
    %v854 = vsel %vm853, %v852, 0
    %v855 = vshrl.u32 %v854, 5
    %v856 = vand.u32 %v854, 31
    %v857 = vsub.s32 32, %v856
    %v858 = vshrl.u32 683565275, %v857
    %v859 = vshll.u32 683565275, %v856
    %v860 = vshrl.u32 2475754826, %v857
    %v861 = vor.u32 %v859, %v860
    %v862 = vshll.u32 2475754826, %v856
    %v863 = vshrl.u32 2131351028, %v857
    %v864 = vor.u32 %v862, %v863
    %v865 = vshll.u32 2131351028, %v856
    %v866 = vshrl.u32 2102212464, %v857
    %v867 = vor.u32 %v865, %v866
    %v868 = vshll.u32 2102212464, %v856
    %v869 = vshrl.u32 920167782, %v857
    %v870 = vor.u32 %v868, %v869
    %v871 = vshll.u32 920167782, %v856
    %v872 = vshrl.u32 1326507024, %v857
    %v873 = vor.u32 %v871, %v872
    %vm874 = vcmp.lt.s32.totalorder %v855, 1
    %vm875 = vcmp.lt.s32.totalorder %v855, 2
    %vm876 = vcmp.lt.s32.totalorder %v855, 3
    %vm877 = vcmp.lt.s32.totalorder %v855, 4
    %v878 = vsel %vm874, %v858, %v861
    %v879 = vsel %vm877, %v867, 2102212464
    %v880 = vsel %vm876, %v864, %v879
    %v881 = vsel %vm875, %v878, %v880
    %v882 = vsel %vm874, %v861, %v864
    %v883 = vsel %vm877, %v870, 920167782
    %v884 = vsel %vm876, %v867, %v883
    %v885 = vsel %vm875, %v882, %v884
    %v886 = vsel %vm874, %v864, %v867
    %v887 = vsel %vm877, %v873, 1326507024
    %v888 = vsel %vm876, %v870, %v887
    %v889 = vsel %vm875, %v886, %v888
    %v890 = vshll.u32 %v850, 8
    %v891 = vmul.u32.u64.compose %v890, %v889
    %v892 = vextract.low.u32 %v891
    %v893 = vextract.high.u32 %v891
    %v894 = vmul.u32.u64.compose %v890, %v885
    %v895 = vextract.low.u32 %v894
    %v896 = vextract.high.u32 %v894
    %v897 = vmul.u32 %v890, %v881
    %v898 = vadd.s32 %v893, %v895
    %vm899 = vc.u32 %v893, %v895
    %v900 = vadd.s32 %v896, 1
    %v901 = vsel %vm899, %v900, %v896
    %v902 = vadd.s32 %v897, %v901
    %v903 = vadd.s32 %v902, 536870912
    %v904 = vshrl.u32 %v903, 30
    %v905 = vshll.u32 %v904, 30
    %v906 = vsub.s32 %v902, %v905
    %vm907 = vcmp.lt.s32.totalorder %v906, 0
    %v908 = vsub.s32 0, %v906
    %v909 = vsel %vm907, %v908, %v906
    %v910 = vclz %v909
    %v911 = vsub.s32 %v910, 2
    %vm912 = vcmp.gt.s32.totalorder 0, %v911
    %v913 = vsel %vm912, 0, %v911
    %v914 = vsub.s32 32, %v913
    %v915 = vshll.u32 %v906, %v913
    %v916 = vshrl.u32 %v898, %v914
    %v917 = vor.u32 %v915, %v916
    %v918 = vsub.s32 4294967266, %v913
    %v919 = vadd.s32 %v918, 127
    %v920 = vshll.u32 %v919, 23
    %v921 = vor.u32 4788187, %v920
    %v922 = vand.u32 2147483647, %v921
    %v924 = vcvt.s32.f32 %v917
    %v925 = vmul.f32 %v924, %v922
    %v926 = vxor.u32 %v925, 2147483648
    %v927 = vsel %vm844, %v926, %v925
    %v928 = vsub.s32 4, %v904
    %v929 = vsel %vm844, %v928, %v904
    %v930 = vsel %vm843, %v105, %v927
    %v931 = vsel %vm843, 0, %v929
    %v932 = vcosq.f32.pop %v930
    %v933 = vsinq.f32.pop %v930
    %vm934 = vweird.f32 %v105
    %v935 = vadd.s32 %v931, 3
    %v936 = vand.u32 %v935, 3
    %vm937 = vcmp.lt.s32.totalorder %v936, 2
    %vm938 = vcmp.eq.s32.totalorder %v936, 0
    %v939 = vxor.u32 %v933, 2147483648
    %v940 = vsel %vm938, %v932, %v939
    %vm941 = vcmp.eq.s32.totalorder %v936, 2
    %v942 = vxor.u32 %v932, 2147483648
    %v943 = vsel %vm941, %v942, %v933
    %v944 = vsel %vm937, %v940, %v943
    %v945 = vsel %vm934, nan, %v944
    %v946 = vand.u32 2147483647, %v106
    %vm947 = vcmp.le.f32.partialorder %v946, 0.7853982
    %vm948 = vcmp.lt.s32.totalorder %v106, 0
    %v949 = vand.u32 %v106, 2139095040
    %v950 = vshrl.u32 %v949, 23
    %v951 = vsub.s32 %v950, 127
    %v952 = vand.u32 2147483647, %v106
    %v953 = vand.u32 %v952, 8388607
    %v954 = vor.u32 %v953, 8388608
    %v955 = vsub.s32 0, %v954
    %v956 = vadd.s32 %v951, 1
    %vm957 = vcmp.gt.s32.totalorder %v956, 0
    %v958 = vsel %vm957, %v956, 0
    %v959 = vshrl.u32 %v958, 5
    %v960 = vand.u32 %v958, 31
    %v961 = vsub.s32 32, %v960
    %v962 = vshrl.u32 683565275, %v961
    %v963 = vshll.u32 683565275, %v960
    %v964 = vshrl.u32 2475754826, %v961
    %v965 = vor.u32 %v963, %v964
    %v966 = vshll.u32 2475754826, %v960
    %v967 = vshrl.u32 2131351028, %v961
    %v968 = vor.u32 %v966, %v967
    %v969 = vshll.u32 2131351028, %v960
    %v970 = vshrl.u32 2102212464, %v961
    %v971 = vor.u32 %v969, %v970
    %v972 = vshll.u32 2102212464, %v960
    %v973 = vshrl.u32 920167782, %v961
    %v974 = vor.u32 %v972, %v973
    %v975 = vshll.u32 920167782, %v960
    %v976 = vshrl.u32 1326507024, %v961
    %v977 = vor.u32 %v975, %v976
    %vm978 = vcmp.lt.s32.totalorder %v959, 1
    %vm979 = vcmp.lt.s32.totalorder %v959, 2
    %vm980 = vcmp.lt.s32.totalorder %v959, 3
    %vm981 = vcmp.lt.s32.totalorder %v959, 4
    %v982 = vsel %vm978, %v962, %v965
    %v983 = vsel %vm981, %v971, 2102212464
    %v984 = vsel %vm980, %v968, %v983
    %v985 = vsel %vm979, %v982, %v984
    %v986 = vsel %vm978, %v965, %v968
    %v987 = vsel %vm981, %v974, 920167782
    %v988 = vsel %vm980, %v971, %v987
    %v989 = vsel %vm979, %v986, %v988
    %v990 = vsel %vm978, %v968, %v971
    %v991 = vsel %vm981, %v977, 1326507024
    %v992 = vsel %vm980, %v974, %v991
    %v993 = vsel %vm979, %v990, %v992
    %v994 = vshll.u32 %v954, 8
    %v995 = vmul.u32.u64.compose %v994, %v993
    %v996 = vextract.low.u32 %v995
    %v997 = vextract.high.u32 %v995
    %v998 = vmul.u32.u64.compose %v994, %v989
    %v999 = vextract.low.u32 %v998
    %v1000 = vextract.high.u32 %v998
    %v1001 = vmul.u32 %v994, %v985
    %v1002 = vadd.s32 %v997, %v999
    %vm1003 = vc.u32 %v997, %v999
    %v1004 = vadd.s32 %v1000, 1
    %v1005 = vsel %vm1003, %v1004, %v1000
    %v1006 = vadd.s32 %v1001, %v1005
    %v1007 = vadd.s32 %v1006, 536870912
    %v1008 = vshrl.u32 %v1007, 30
    %v1009 = vshll.u32 %v1008, 30
    %v1010 = vsub.s32 %v1006, %v1009
    %vm1011 = vcmp.lt.s32.totalorder %v1010, 0
    %v1012 = vsub.s32 0, %v1010
    %v1013 = vsel %vm1011, %v1012, %v1010
    %v1014 = vclz %v1013
    %v1015 = vsub.s32 %v1014, 2
    %vm1016 = vcmp.gt.s32.totalorder 0, %v1015
    %v1017 = vsel %vm1016, 0, %v1015
    %v1018 = vsub.s32 32, %v1017
    %v1019 = vshll.u32 %v1010, %v1017
    %v1020 = vshrl.u32 %v1002, %v1018
    %v1021 = vor.u32 %v1019, %v1020
    %v1022 = vsub.s32 4294967266, %v1017
    %v1023 = vadd.s32 %v1022, 127
    %v1024 = vshll.u32 %v1023, 23
    %v1025 = vor.u32 4788187, %v1024
    %v1026 = vand.u32 2147483647, %v1025
    %v1028 = vcvt.s32.f32 %v1021
    %v1029 = vmul.f32 %v1028, %v1026
    %v1030 = vxor.u32 %v1029, 2147483648
    %v1031 = vsel %vm948, %v1030, %v1029
    %v1032 = vsub.s32 4, %v1008
    %v1033 = vsel %vm948, %v1032, %v1008
    %v1034 = vsel %vm947, %v106, %v1031
    %v1035 = vsel %vm947, 0, %v1033
    %v1036 = vcosq.f32.pop %v1034
    %v1037 = vsinq.f32.pop %v1034
    %vm1038 = vweird.f32 %v106
    %v1039 = vadd.s32 %v1035, 3
    %v1040 = vand.u32 %v1039, 3
    %vm1041 = vcmp.lt.s32.totalorder %v1040, 2
    %vm1042 = vcmp.eq.s32.totalorder %v1040, 0
    %v1043 = vxor.u32 %v1037, 2147483648
    %v1044 = vsel %vm1042, %v1036, %v1043
    %vm1045 = vcmp.eq.s32.totalorder %v1040, 2
    %v1046 = vxor.u32 %v1036, 2147483648
    %v1047 = vsel %vm1045, %v1046, %v1037
    %v1048 = vsel %vm1041, %v1044, %v1047
    %v1049 = vsel %vm1038, nan, %v1048
    %v1050 = vand.u32 2147483647, %v107
    %vm1051 = vcmp.le.f32.partialorder %v1050, 0.7853982
    %vm1052 = vcmp.lt.s32.totalorder %v107, 0
    %v1053 = vand.u32 %v107, 2139095040
    %v1054 = vshrl.u32 %v1053, 23
    %v1055 = vsub.s32 %v1054, 127
    %v1056 = vand.u32 2147483647, %v107
    %v1057 = vand.u32 %v1056, 8388607
    %v1058 = vor.u32 %v1057, 8388608
    %v1059 = vsub.s32 0, %v1058
    %v1060 = vadd.s32 %v1055, 1
    %vm1061 = vcmp.gt.s32.totalorder %v1060, 0
    %v1062 = vsel %vm1061, %v1060, 0
    %v1063 = vshrl.u32 %v1062, 5
    %v1064 = vand.u32 %v1062, 31
    %v1065 = vsub.s32 32, %v1064
    %v1066 = vshrl.u32 683565275, %v1065
    %v1067 = vshll.u32 683565275, %v1064
    %v1068 = vshrl.u32 2475754826, %v1065
    %v1069 = vor.u32 %v1067, %v1068
    %v1070 = vshll.u32 2475754826, %v1064
    %v1071 = vshrl.u32 2131351028, %v1065
    %v1072 = vor.u32 %v1070, %v1071
    %v1073 = vshll.u32 2131351028, %v1064
    %v1074 = vshrl.u32 2102212464, %v1065
    %v1075 = vor.u32 %v1073, %v1074
    %v1076 = vshll.u32 2102212464, %v1064
    %v1077 = vshrl.u32 920167782, %v1065
    %v1078 = vor.u32 %v1076, %v1077
    %v1079 = vshll.u32 920167782, %v1064
    %v1080 = vshrl.u32 1326507024, %v1065
    %v1081 = vor.u32 %v1079, %v1080
    %vm1082 = vcmp.lt.s32.totalorder %v1063, 1
    %vm1083 = vcmp.lt.s32.totalorder %v1063, 2
    %vm1084 = vcmp.lt.s32.totalorder %v1063, 3
    %vm1085 = vcmp.lt.s32.totalorder %v1063, 4
    %v1086 = vsel %vm1082, %v1066, %v1069
    %v1087 = vsel %vm1085, %v1075, 2102212464
    %v1088 = vsel %vm1084, %v1072, %v1087
    %v1089 = vsel %vm1083, %v1086, %v1088
    %v1090 = vsel %vm1082, %v1069, %v1072
    %v1091 = vsel %vm1085, %v1078, 920167782
    %v1092 = vsel %vm1084, %v1075, %v1091
    %v1093 = vsel %vm1083, %v1090, %v1092
    %v1094 = vsel %vm1082, %v1072, %v1075
    %v1095 = vsel %vm1085, %v1081, 1326507024
    %v1096 = vsel %vm1084, %v1078, %v1095
    %v1097 = vsel %vm1083, %v1094, %v1096
    %v1098 = vshll.u32 %v1058, 8
    %v1099 = vmul.u32.u64.compose %v1098, %v1097
    %v1100 = vextract.low.u32 %v1099
    %v1101 = vextract.high.u32 %v1099
    %v1102 = vmul.u32.u64.compose %v1098, %v1093
    %v1103 = vextract.low.u32 %v1102
    %v1104 = vextract.high.u32 %v1102
    %v1105 = vmul.u32 %v1098, %v1089
    %v1106 = vadd.s32 %v1101, %v1103
    %vm1107 = vc.u32 %v1101, %v1103
    %v1108 = vadd.s32 %v1104, 1
    %v1109 = vsel %vm1107, %v1108, %v1104
    %v1110 = vadd.s32 %v1105, %v1109
    %v1111 = vadd.s32 %v1110, 536870912
    %v1112 = vshrl.u32 %v1111, 30
    %v1113 = vshll.u32 %v1112, 30
    %v1114 = vsub.s32 %v1110, %v1113
    %vm1115 = vcmp.lt.s32.totalorder %v1114, 0
    %v1116 = vsub.s32 0, %v1114
    %v1117 = vsel %vm1115, %v1116, %v1114
    %v1118 = vclz %v1117
    %v1119 = vsub.s32 %v1118, 2
    %vm1120 = vcmp.gt.s32.totalorder 0, %v1119
    %v1121 = vsel %vm1120, 0, %v1119
    %v1122 = vsub.s32 32, %v1121
    %v1123 = vshll.u32 %v1114, %v1121
    %v1124 = vshrl.u32 %v1106, %v1122
    %v1125 = vor.u32 %v1123, %v1124
    %v1126 = vsub.s32 4294967266, %v1121
    %v1127 = vadd.s32 %v1126, 127
    %v1128 = vshll.u32 %v1127, 23
    %v1129 = vor.u32 4788187, %v1128
    %v1130 = vand.u32 2147483647, %v1129
    %v1132 = vcvt.s32.f32 %v1125
    %v1133 = vmul.f32 %v1132, %v1130
    %v1134 = vxor.u32 %v1133, 2147483648
    %v1135 = vsel %vm1052, %v1134, %v1133
    %v1136 = vsub.s32 4, %v1112
    %v1137 = vsel %vm1052, %v1136, %v1112
    %v1138 = vsel %vm1051, %v107, %v1135
    %v1139 = vsel %vm1051, 0, %v1137
    %v1140 = vcosq.f32.pop %v1138
    %v1141 = vsinq.f32.pop %v1138
    %vm1142 = vweird.f32 %v107
    %v1143 = vadd.s32 %v1139, 3
    %v1144 = vand.u32 %v1143, 3
    %vm1145 = vcmp.lt.s32.totalorder %v1144, 2
    %vm1146 = vcmp.eq.s32.totalorder %v1144, 0
    %v1147 = vxor.u32 %v1141, 2147483648
    %v1148 = vsel %vm1146, %v1140, %v1147
    %vm1149 = vcmp.eq.s32.totalorder %v1144, 2
    %v1150 = vxor.u32 %v1140, 2147483648
    %v1151 = vsel %vm1149, %v1150, %v1141
    %v1152 = vsel %vm1145, %v1148, %v1151
    %v1153 = vsel %vm1142, nan, %v1152
    %v1154 = vand.u32 2147483647, %v108
    %vm1155 = vcmp.le.f32.partialorder %v1154, 0.7853982
    %vm1156 = vcmp.lt.s32.totalorder %v108, 0
    %v1157 = vand.u32 %v108, 2139095040
    %v1158 = vshrl.u32 %v1157, 23
    %v1159 = vsub.s32 %v1158, 127
    %v1160 = vand.u32 2147483647, %v108
    %v1161 = vand.u32 %v1160, 8388607
    %v1162 = vor.u32 %v1161, 8388608
    %v1163 = vsub.s32 0, %v1162
    %v1164 = vadd.s32 %v1159, 1
    %vm1165 = vcmp.gt.s32.totalorder %v1164, 0
    %v1166 = vsel %vm1165, %v1164, 0
    %v1167 = vshrl.u32 %v1166, 5
    %v1168 = vand.u32 %v1166, 31
    %v1169 = vsub.s32 32, %v1168
    %v1170 = vshrl.u32 683565275, %v1169
    %v1171 = vshll.u32 683565275, %v1168
    %v1172 = vshrl.u32 2475754826, %v1169
    %v1173 = vor.u32 %v1171, %v1172
    %v1174 = vshll.u32 2475754826, %v1168
    %v1175 = vshrl.u32 2131351028, %v1169
    %v1176 = vor.u32 %v1174, %v1175
    %v1177 = vshll.u32 2131351028, %v1168
    %v1178 = vshrl.u32 2102212464, %v1169
    %v1179 = vor.u32 %v1177, %v1178
    %v1180 = vshll.u32 2102212464, %v1168
    %v1181 = vshrl.u32 920167782, %v1169
    %v1182 = vor.u32 %v1180, %v1181
    %v1183 = vshll.u32 920167782, %v1168
    %v1184 = vshrl.u32 1326507024, %v1169
    %v1185 = vor.u32 %v1183, %v1184
    %vm1186 = vcmp.lt.s32.totalorder %v1167, 1
    %vm1187 = vcmp.lt.s32.totalorder %v1167, 2
    %vm1188 = vcmp.lt.s32.totalorder %v1167, 3
    %vm1189 = vcmp.lt.s32.totalorder %v1167, 4
    %v1190 = vsel %vm1186, %v1170, %v1173
    %v1191 = vsel %vm1189, %v1179, 2102212464
    %v1192 = vsel %vm1188, %v1176, %v1191
    %v1193 = vsel %vm1187, %v1190, %v1192
    %v1194 = vsel %vm1186, %v1173, %v1176
    %v1195 = vsel %vm1189, %v1182, 920167782
    %v1196 = vsel %vm1188, %v1179, %v1195
    %v1197 = vsel %vm1187, %v1194, %v1196
    %v1198 = vsel %vm1186, %v1176, %v1179
    %v1199 = vsel %vm1189, %v1185, 1326507024
    %v1200 = vsel %vm1188, %v1182, %v1199
    %v1201 = vsel %vm1187, %v1198, %v1200
    %v1202 = vshll.u32 %v1162, 8
    %v1203 = vmul.u32.u64.compose %v1202, %v1201
    %v1204 = vextract.low.u32 %v1203
    %v1205 = vextract.high.u32 %v1203
    %v1206 = vmul.u32.u64.compose %v1202, %v1197
    %v1207 = vextract.low.u32 %v1206
    %v1208 = vextract.high.u32 %v1206
    %v1209 = vmul.u32 %v1202, %v1193
    %v1210 = vadd.s32 %v1205, %v1207
    %vm1211 = vc.u32 %v1205, %v1207
    %v1212 = vadd.s32 %v1208, 1
    %v1213 = vsel %vm1211, %v1212, %v1208
    %v1214 = vadd.s32 %v1209, %v1213
    %v1215 = vadd.s32 %v1214, 536870912
    %v1216 = vshrl.u32 %v1215, 30
    %v1217 = vshll.u32 %v1216, 30
    %v1218 = vsub.s32 %v1214, %v1217
    %vm1219 = vcmp.lt.s32.totalorder %v1218, 0
    %v1220 = vsub.s32 0, %v1218
    %v1221 = vsel %vm1219, %v1220, %v1218
    %v1222 = vclz %v1221
    %v1223 = vsub.s32 %v1222, 2
    %vm1224 = vcmp.gt.s32.totalorder 0, %v1223
    %v1225 = vsel %vm1224, 0, %v1223
    %v1226 = vsub.s32 32, %v1225
    %v1227 = vshll.u32 %v1218, %v1225
    %v1228 = vshrl.u32 %v1210, %v1226
    %v1229 = vor.u32 %v1227, %v1228
    %v1230 = vsub.s32 4294967266, %v1225
    %v1231 = vadd.s32 %v1230, 127
    %v1232 = vshll.u32 %v1231, 23
    %v1233 = vor.u32 4788187, %v1232
    %v1234 = vand.u32 2147483647, %v1233
    %v1236 = vcvt.s32.f32 %v1229
    %v1237 = vmul.f32 %v1236, %v1234
    %v1238 = vxor.u32 %v1237, 2147483648
    %v1239 = vsel %vm1156, %v1238, %v1237
    %v1240 = vsub.s32 4, %v1216
    %v1241 = vsel %vm1156, %v1240, %v1216
    %v1242 = vsel %vm1155, %v108, %v1239
    %v1243 = vsel %vm1155, 0, %v1241
    %v1244 = vcosq.f32.pop %v1242
    %v1245 = vsinq.f32.pop %v1242
    %vm1246 = vweird.f32 %v108
    %v1247 = vadd.s32 %v1243, 3
    %v1248 = vand.u32 %v1247, 3
    %vm1249 = vcmp.lt.s32.totalorder %v1248, 2
    %vm1250 = vcmp.eq.s32.totalorder %v1248, 0
    %v1251 = vxor.u32 %v1245, 2147483648
    %v1252 = vsel %vm1250, %v1244, %v1251
    %vm1253 = vcmp.eq.s32.totalorder %v1248, 2
    %v1254 = vxor.u32 %v1244, 2147483648
    %v1255 = vsel %vm1253, %v1254, %v1245
    %v1256 = vsel %vm1249, %v1252, %v1255
    %v1257 = vsel %vm1246, nan, %v1256
    %v1258 = vand.u32 2147483647, %v109
    %vm1259 = vcmp.le.f32.partialorder %v1258, 0.7853982
    %vm1260 = vcmp.lt.s32.totalorder %v109, 0
    %v1261 = vand.u32 %v109, 2139095040
    %v1262 = vshrl.u32 %v1261, 23
    %v1263 = vsub.s32 %v1262, 127
    %v1264 = vand.u32 2147483647, %v109
    %v1265 = vand.u32 %v1264, 8388607
    %v1266 = vor.u32 %v1265, 8388608
    %v1267 = vsub.s32 0, %v1266
    %v1268 = vadd.s32 %v1263, 1
    %vm1269 = vcmp.gt.s32.totalorder %v1268, 0
    %v1270 = vsel %vm1269, %v1268, 0
    %v1271 = vshrl.u32 %v1270, 5
    %v1272 = vand.u32 %v1270, 31
    %v1273 = vsub.s32 32, %v1272
    %v1274 = vshrl.u32 683565275, %v1273
    %v1275 = vshll.u32 683565275, %v1272
    %v1276 = vshrl.u32 2475754826, %v1273
    %v1277 = vor.u32 %v1275, %v1276
    %v1278 = vshll.u32 2475754826, %v1272
    %v1279 = vshrl.u32 2131351028, %v1273
    %v1280 = vor.u32 %v1278, %v1279
    %v1281 = vshll.u32 2131351028, %v1272
    %v1282 = vshrl.u32 2102212464, %v1273
    %v1283 = vor.u32 %v1281, %v1282
    %v1284 = vshll.u32 2102212464, %v1272
    %v1285 = vshrl.u32 920167782, %v1273
    %v1286 = vor.u32 %v1284, %v1285
    %v1287 = vshll.u32 920167782, %v1272
    %v1288 = vshrl.u32 1326507024, %v1273
    %v1289 = vor.u32 %v1287, %v1288
    %vm1290 = vcmp.lt.s32.totalorder %v1271, 1
    %vm1291 = vcmp.lt.s32.totalorder %v1271, 2
    %vm1292 = vcmp.lt.s32.totalorder %v1271, 3
    %vm1293 = vcmp.lt.s32.totalorder %v1271, 4
    %v1294 = vsel %vm1290, %v1274, %v1277
    %v1295 = vsel %vm1293, %v1283, 2102212464
    %v1296 = vsel %vm1292, %v1280, %v1295
    %v1297 = vsel %vm1291, %v1294, %v1296
    %v1298 = vsel %vm1290, %v1277, %v1280
    %v1299 = vsel %vm1293, %v1286, 920167782
    %v1300 = vsel %vm1292, %v1283, %v1299
    %v1301 = vsel %vm1291, %v1298, %v1300
    %v1302 = vsel %vm1290, %v1280, %v1283
    %v1303 = vsel %vm1293, %v1289, 1326507024
    %v1304 = vsel %vm1292, %v1286, %v1303
    %v1305 = vsel %vm1291, %v1302, %v1304
    %v1306 = vshll.u32 %v1266, 8
    %v1307 = vmul.u32.u64.compose %v1306, %v1305
    %v1308 = vextract.low.u32 %v1307
    %v1309 = vextract.high.u32 %v1307
    %v1310 = vmul.u32.u64.compose %v1306, %v1301
    %v1311 = vextract.low.u32 %v1310
    %v1312 = vextract.high.u32 %v1310
    %v1313 = vmul.u32 %v1306, %v1297
    %v1314 = vadd.s32 %v1309, %v1311
    %vm1315 = vc.u32 %v1309, %v1311
    %v1316 = vadd.s32 %v1312, 1
    %v1317 = vsel %vm1315, %v1316, %v1312
    %v1318 = vadd.s32 %v1313, %v1317
    %v1319 = vadd.s32 %v1318, 536870912
    %v1320 = vshrl.u32 %v1319, 30
    %v1321 = vshll.u32 %v1320, 30
    %v1322 = vsub.s32 %v1318, %v1321
    %vm1323 = vcmp.lt.s32.totalorder %v1322, 0
    %v1324 = vsub.s32 0, %v1322
    %v1325 = vsel %vm1323, %v1324, %v1322
    %v1326 = vclz %v1325
    %v1327 = vsub.s32 %v1326, 2
    %vm1328 = vcmp.gt.s32.totalorder 0, %v1327
    %v1329 = vsel %vm1328, 0, %v1327
    %v1330 = vsub.s32 32, %v1329
    %v1331 = vshll.u32 %v1322, %v1329
    %v1332 = vshrl.u32 %v1314, %v1330
    %v1333 = vor.u32 %v1331, %v1332
    %v1334 = vsub.s32 4294967266, %v1329
    %v1335 = vadd.s32 %v1334, 127
    %v1336 = vshll.u32 %v1335, 23
    %v1337 = vor.u32 4788187, %v1336
    %v1338 = vand.u32 2147483647, %v1337
    %v1340 = vcvt.s32.f32 %v1333
    %v1341 = vmul.f32 %v1340, %v1338
    %v1342 = vxor.u32 %v1341, 2147483648
    %v1343 = vsel %vm1260, %v1342, %v1341
    %v1344 = vsub.s32 4, %v1320
    %v1345 = vsel %vm1260, %v1344, %v1320
    %v1346 = vsel %vm1259, %v109, %v1343
    %v1347 = vsel %vm1259, 0, %v1345
    %v1348 = vcosq.f32.pop %v1346
    %v1349 = vsinq.f32.pop %v1346
    %vm1350 = vweird.f32 %v109
    %v1351 = vadd.s32 %v1347, 3
    %v1352 = vand.u32 %v1351, 3
    %vm1353 = vcmp.lt.s32.totalorder %v1352, 2
    %vm1354 = vcmp.eq.s32.totalorder %v1352, 0
    %v1355 = vxor.u32 %v1349, 2147483648
    %v1356 = vsel %vm1354, %v1348, %v1355
    %vm1357 = vcmp.eq.s32.totalorder %v1352, 2
    %v1358 = vxor.u32 %v1348, 2147483648
    %v1359 = vsel %vm1357, %v1358, %v1349
    %v1360 = vsel %vm1353, %v1356, %v1359
    %v1361 = vsel %vm1350, nan, %v1360
    %v1362 = vand.u32 2147483647, %v110
    %vm1363 = vcmp.le.f32.partialorder %v1362, 0.7853982
    %vm1364 = vcmp.lt.s32.totalorder %v110, 0
    %v1365 = vand.u32 %v110, 2139095040
    %v1366 = vshrl.u32 %v1365, 23
    %v1367 = vsub.s32 %v1366, 127
    %v1368 = vand.u32 2147483647, %v110
    %v1369 = vand.u32 %v1368, 8388607
    %v1370 = vor.u32 %v1369, 8388608
    %v1371 = vsub.s32 0, %v1370
    %v1372 = vadd.s32 %v1367, 1
    %vm1373 = vcmp.gt.s32.totalorder %v1372, 0
    %v1374 = vsel %vm1373, %v1372, 0
    %v1375 = vshrl.u32 %v1374, 5
    %v1376 = vand.u32 %v1374, 31
    %v1377 = vsub.s32 32, %v1376
    %v1378 = vshrl.u32 683565275, %v1377
    %v1379 = vshll.u32 683565275, %v1376
    %v1380 = vshrl.u32 2475754826, %v1377
    %v1381 = vor.u32 %v1379, %v1380
    %v1382 = vshll.u32 2475754826, %v1376
    %v1383 = vshrl.u32 2131351028, %v1377
    %v1384 = vor.u32 %v1382, %v1383
    %v1385 = vshll.u32 2131351028, %v1376
    %v1386 = vshrl.u32 2102212464, %v1377
    %v1387 = vor.u32 %v1385, %v1386
    %v1388 = vshll.u32 2102212464, %v1376
    %v1389 = vshrl.u32 920167782, %v1377
    %v1390 = vor.u32 %v1388, %v1389
    %v1391 = vshll.u32 920167782, %v1376
    %v1392 = vshrl.u32 1326507024, %v1377
    %v1393 = vor.u32 %v1391, %v1392
    %vm1394 = vcmp.lt.s32.totalorder %v1375, 1
    %vm1395 = vcmp.lt.s32.totalorder %v1375, 2
    %vm1396 = vcmp.lt.s32.totalorder %v1375, 3
    %vm1397 = vcmp.lt.s32.totalorder %v1375, 4
    %v1398 = vsel %vm1394, %v1378, %v1381
    %v1399 = vsel %vm1397, %v1387, 2102212464
    %v1400 = vsel %vm1396, %v1384, %v1399
    %v1401 = vsel %vm1395, %v1398, %v1400
    %v1402 = vsel %vm1394, %v1381, %v1384
    %v1403 = vsel %vm1397, %v1390, 920167782
    %v1404 = vsel %vm1396, %v1387, %v1403
    %v1405 = vsel %vm1395, %v1402, %v1404
    %v1406 = vsel %vm1394, %v1384, %v1387
    %v1407 = vsel %vm1397, %v1393, 1326507024
    %v1408 = vsel %vm1396, %v1390, %v1407
    %v1409 = vsel %vm1395, %v1406, %v1408
    %v1410 = vshll.u32 %v1370, 8
    %v1411 = vmul.u32.u64.compose %v1410, %v1409
    %v1412 = vextract.low.u32 %v1411
    %v1413 = vextract.high.u32 %v1411
    %v1414 = vmul.u32.u64.compose %v1410, %v1405
    %v1415 = vextract.low.u32 %v1414
    %v1416 = vextract.high.u32 %v1414
    %v1417 = vmul.u32 %v1410, %v1401
    %v1418 = vadd.s32 %v1413, %v1415
    %vm1419 = vc.u32 %v1413, %v1415
    %v1420 = vadd.s32 %v1416, 1
    %v1421 = vsel %vm1419, %v1420, %v1416
    %v1422 = vadd.s32 %v1417, %v1421
    %v1423 = vadd.s32 %v1422, 536870912
    %v1424 = vshrl.u32 %v1423, 30
    %v1425 = vshll.u32 %v1424, 30
    %v1426 = vsub.s32 %v1422, %v1425
    %vm1427 = vcmp.lt.s32.totalorder %v1426, 0
    %v1428 = vsub.s32 0, %v1426
    %v1429 = vsel %vm1427, %v1428, %v1426
    %v1430 = vclz %v1429
    %v1431 = vsub.s32 %v1430, 2
    %vm1432 = vcmp.gt.s32.totalorder 0, %v1431
    %v1433 = vsel %vm1432, 0, %v1431
    %v1434 = vsub.s32 32, %v1433
    %v1435 = vshll.u32 %v1426, %v1433
    %v1436 = vshrl.u32 %v1418, %v1434
    %v1437 = vor.u32 %v1435, %v1436
    %v1438 = vsub.s32 4294967266, %v1433
    %v1439 = vadd.s32 %v1438, 127
    %v1440 = vshll.u32 %v1439, 23
    %v1441 = vor.u32 4788187, %v1440
    %v1442 = vand.u32 2147483647, %v1441
    %v1444 = vcvt.s32.f32 %v1437
    %v1445 = vmul.f32 %v1444, %v1442
    %v1446 = vxor.u32 %v1445, 2147483648
    %v1447 = vsel %vm1364, %v1446, %v1445
    %v1448 = vsub.s32 4, %v1424
    %v1449 = vsel %vm1364, %v1448, %v1424
    %v1450 = vsel %vm1363, %v110, %v1447
    %v1451 = vsel %vm1363, 0, %v1449
    %v1452 = vcosq.f32.pop %v1450
    %v1453 = vsinq.f32.pop %v1450
    %vm1454 = vweird.f32 %v110
    %v1455 = vadd.s32 %v1451, 3
    %v1456 = vand.u32 %v1455, 3
    %vm1457 = vcmp.lt.s32.totalorder %v1456, 2
    %vm1458 = vcmp.eq.s32.totalorder %v1456, 0
    %v1459 = vxor.u32 %v1453, 2147483648
    %v1460 = vsel %vm1458, %v1452, %v1459
    %vm1461 = vcmp.eq.s32.totalorder %v1456, 2
    %v1462 = vxor.u32 %v1452, 2147483648
    %v1463 = vsel %vm1461, %v1462, %v1453
    %v1464 = vsel %vm1457, %v1460, %v1463
    %v1465 = vsel %vm1454, nan, %v1464
    %v1466 = vand.u32 2147483647, %v111
    %vm1467 = vcmp.le.f32.partialorder %v1466, 0.7853982
    %vm1468 = vcmp.lt.s32.totalorder %v111, 0
    %v1469 = vand.u32 %v111, 2139095040
    %v1470 = vshrl.u32 %v1469, 23
    %v1471 = vsub.s32 %v1470, 127
    %v1472 = vand.u32 2147483647, %v111
    %v1473 = vand.u32 %v1472, 8388607
    %v1474 = vor.u32 %v1473, 8388608
    %v1475 = vsub.s32 0, %v1474
    %v1476 = vadd.s32 %v1471, 1
    %vm1477 = vcmp.gt.s32.totalorder %v1476, 0
    %v1478 = vsel %vm1477, %v1476, 0
    %v1479 = vshrl.u32 %v1478, 5
    %v1480 = vand.u32 %v1478, 31
    %v1481 = vsub.s32 32, %v1480
    %v1482 = vshrl.u32 683565275, %v1481
    %v1483 = vshll.u32 683565275, %v1480
    %v1484 = vshrl.u32 2475754826, %v1481
    %v1485 = vor.u32 %v1483, %v1484
    %v1486 = vshll.u32 2475754826, %v1480
    %v1487 = vshrl.u32 2131351028, %v1481
    %v1488 = vor.u32 %v1486, %v1487
    %v1489 = vshll.u32 2131351028, %v1480
    %v1490 = vshrl.u32 2102212464, %v1481
    %v1491 = vor.u32 %v1489, %v1490
    %v1492 = vshll.u32 2102212464, %v1480
    %v1493 = vshrl.u32 920167782, %v1481
    %v1494 = vor.u32 %v1492, %v1493
    %v1495 = vshll.u32 920167782, %v1480
    %v1496 = vshrl.u32 1326507024, %v1481
    %v1497 = vor.u32 %v1495, %v1496
    %vm1498 = vcmp.lt.s32.totalorder %v1479, 1
    %vm1499 = vcmp.lt.s32.totalorder %v1479, 2
    %vm1500 = vcmp.lt.s32.totalorder %v1479, 3
    %vm1501 = vcmp.lt.s32.totalorder %v1479, 4
    %v1502 = vsel %vm1498, %v1482, %v1485
    %v1503 = vsel %vm1501, %v1491, 2102212464
    %v1504 = vsel %vm1500, %v1488, %v1503
    %v1505 = vsel %vm1499, %v1502, %v1504
    %v1506 = vsel %vm1498, %v1485, %v1488
    %v1507 = vsel %vm1501, %v1494, 920167782
    %v1508 = vsel %vm1500, %v1491, %v1507
    %v1509 = vsel %vm1499, %v1506, %v1508
    %v1510 = vsel %vm1498, %v1488, %v1491
    %v1511 = vsel %vm1501, %v1497, 1326507024
    %v1512 = vsel %vm1500, %v1494, %v1511
    %v1513 = vsel %vm1499, %v1510, %v1512
    %v1514 = vshll.u32 %v1474, 8
    %v1515 = vmul.u32.u64.compose %v1514, %v1513
    %v1516 = vextract.low.u32 %v1515
    %v1517 = vextract.high.u32 %v1515
    %v1518 = vmul.u32.u64.compose %v1514, %v1509
    %v1519 = vextract.low.u32 %v1518
    %v1520 = vextract.high.u32 %v1518
    %v1521 = vmul.u32 %v1514, %v1505
    %v1522 = vadd.s32 %v1517, %v1519
    %vm1523 = vc.u32 %v1517, %v1519
    %v1524 = vadd.s32 %v1520, 1
    %v1525 = vsel %vm1523, %v1524, %v1520
    %v1526 = vadd.s32 %v1521, %v1525
    %v1527 = vadd.s32 %v1526, 536870912
    %v1528 = vshrl.u32 %v1527, 30
    %v1529 = vshll.u32 %v1528, 30
    %v1530 = vsub.s32 %v1526, %v1529
    %vm1531 = vcmp.lt.s32.totalorder %v1530, 0
    %v1532 = vsub.s32 0, %v1530
    %v1533 = vsel %vm1531, %v1532, %v1530
    %v1534 = vclz %v1533
    %v1535 = vsub.s32 %v1534, 2
    %vm1536 = vcmp.gt.s32.totalorder 0, %v1535
    %v1537 = vsel %vm1536, 0, %v1535
    %v1538 = vsub.s32 32, %v1537
    %v1539 = vshll.u32 %v1530, %v1537
    %v1540 = vshrl.u32 %v1522, %v1538
    %v1541 = vor.u32 %v1539, %v1540
    %v1542 = vsub.s32 4294967266, %v1537
    %v1543 = vadd.s32 %v1542, 127
    %v1544 = vshll.u32 %v1543, 23
    %v1545 = vor.u32 4788187, %v1544
    %v1546 = vand.u32 2147483647, %v1545
    %v1548 = vcvt.s32.f32 %v1541
    %v1549 = vmul.f32 %v1548, %v1546
    %v1550 = vxor.u32 %v1549, 2147483648
    %v1551 = vsel %vm1468, %v1550, %v1549
    %v1552 = vsub.s32 4, %v1528
    %v1553 = vsel %vm1468, %v1552, %v1528
    %v1554 = vsel %vm1467, %v111, %v1551
    %v1555 = vsel %vm1467, 0, %v1553
    %v1556 = vcosq.f32.pop %v1554
    %v1557 = vsinq.f32.pop %v1554
    %vm1558 = vweird.f32 %v111
    %v1559 = vadd.s32 %v1555, 3
    %v1560 = vand.u32 %v1559, 3
    %vm1561 = vcmp.lt.s32.totalorder %v1560, 2
    %vm1562 = vcmp.eq.s32.totalorder %v1560, 0
    %v1563 = vxor.u32 %v1557, 2147483648
    %v1564 = vsel %vm1562, %v1556, %v1563
    %vm1565 = vcmp.eq.s32.totalorder %v1560, 2
    %v1566 = vxor.u32 %v1556, 2147483648
    %v1567 = vsel %vm1565, %v1566, %v1557
    %v1568 = vsel %vm1561, %v1564, %v1567
    %v1569 = vsel %vm1558, nan, %v1568
    %v1570 = vand.u32 2147483647, %v112
    %vm1571 = vcmp.le.f32.partialorder %v1570, 0.7853982
    %vm1572 = vcmp.lt.s32.totalorder %v112, 0
    %v1573 = vand.u32 %v112, 2139095040
    %v1574 = vshrl.u32 %v1573, 23
    %v1575 = vsub.s32 %v1574, 127
    %v1576 = vand.u32 2147483647, %v112
    %v1577 = vand.u32 %v1576, 8388607
    %v1578 = vor.u32 %v1577, 8388608
    %v1579 = vsub.s32 0, %v1578
    %v1580 = vadd.s32 %v1575, 1
    %vm1581 = vcmp.gt.s32.totalorder %v1580, 0
    %v1582 = vsel %vm1581, %v1580, 0
    %v1583 = vshrl.u32 %v1582, 5
    %v1584 = vand.u32 %v1582, 31
    %v1585 = vsub.s32 32, %v1584
    %v1586 = vshrl.u32 683565275, %v1585
    %v1587 = vshll.u32 683565275, %v1584
    %v1588 = vshrl.u32 2475754826, %v1585
    %v1589 = vor.u32 %v1587, %v1588
    %v1590 = vshll.u32 2475754826, %v1584
    %v1591 = vshrl.u32 2131351028, %v1585
    %v1592 = vor.u32 %v1590, %v1591
    %v1593 = vshll.u32 2131351028, %v1584
    %v1594 = vshrl.u32 2102212464, %v1585
    %v1595 = vor.u32 %v1593, %v1594
    %v1596 = vshll.u32 2102212464, %v1584
    %v1597 = vshrl.u32 920167782, %v1585
    %v1598 = vor.u32 %v1596, %v1597
    %v1599 = vshll.u32 920167782, %v1584
    %v1600 = vshrl.u32 1326507024, %v1585
    %v1601 = vor.u32 %v1599, %v1600
    %vm1602 = vcmp.lt.s32.totalorder %v1583, 1
    %vm1603 = vcmp.lt.s32.totalorder %v1583, 2
    %vm1604 = vcmp.lt.s32.totalorder %v1583, 3
    %vm1605 = vcmp.lt.s32.totalorder %v1583, 4
    %v1606 = vsel %vm1602, %v1586, %v1589
    %v1607 = vsel %vm1605, %v1595, 2102212464
    %v1608 = vsel %vm1604, %v1592, %v1607
    %v1609 = vsel %vm1603, %v1606, %v1608
    %v1610 = vsel %vm1602, %v1589, %v1592
    %v1611 = vsel %vm1605, %v1598, 920167782
    %v1612 = vsel %vm1604, %v1595, %v1611
    %v1613 = vsel %vm1603, %v1610, %v1612
    %v1614 = vsel %vm1602, %v1592, %v1595
    %v1615 = vsel %vm1605, %v1601, 1326507024
    %v1616 = vsel %vm1604, %v1598, %v1615
    %v1617 = vsel %vm1603, %v1614, %v1616
    %v1618 = vshll.u32 %v1578, 8
    %v1619 = vmul.u32.u64.compose %v1618, %v1617
    %v1620 = vextract.low.u32 %v1619
    %v1621 = vextract.high.u32 %v1619
    %v1622 = vmul.u32.u64.compose %v1618, %v1613
    %v1623 = vextract.low.u32 %v1622
    %v1624 = vextract.high.u32 %v1622
    %v1625 = vmul.u32 %v1618, %v1609
    %v1626 = vadd.s32 %v1621, %v1623
    %vm1627 = vc.u32 %v1621, %v1623
    %v1628 = vadd.s32 %v1624, 1
    %v1629 = vsel %vm1627, %v1628, %v1624
    %v1630 = vadd.s32 %v1625, %v1629
    %v1631 = vadd.s32 %v1630, 536870912
    %v1632 = vshrl.u32 %v1631, 30
    %v1633 = vshll.u32 %v1632, 30
    %v1634 = vsub.s32 %v1630, %v1633
    %vm1635 = vcmp.lt.s32.totalorder %v1634, 0
    %v1636 = vsub.s32 0, %v1634
    %v1637 = vsel %vm1635, %v1636, %v1634
    %v1638 = vclz %v1637
    %v1639 = vsub.s32 %v1638, 2
    %vm1640 = vcmp.gt.s32.totalorder 0, %v1639
    %v1641 = vsel %vm1640, 0, %v1639
    %v1642 = vsub.s32 32, %v1641
    %v1643 = vshll.u32 %v1634, %v1641
    %v1644 = vshrl.u32 %v1626, %v1642
    %v1645 = vor.u32 %v1643, %v1644
    %v1646 = vsub.s32 4294967266, %v1641
    %v1647 = vadd.s32 %v1646, 127
    %v1648 = vshll.u32 %v1647, 23
    %v1649 = vor.u32 4788187, %v1648
    %v1650 = vand.u32 2147483647, %v1649
    %v1652 = vcvt.s32.f32 %v1645
    %v1653 = vmul.f32 %v1652, %v1650
    %v1654 = vxor.u32 %v1653, 2147483648
    %v1655 = vsel %vm1572, %v1654, %v1653
    %v1656 = vsub.s32 4, %v1632
    %v1657 = vsel %vm1572, %v1656, %v1632
    %v1658 = vsel %vm1571, %v112, %v1655
    %v1659 = vsel %vm1571, 0, %v1657
    %v1660 = vcosq.f32.pop %v1658
    %v1661 = vsinq.f32.pop %v1658
    %vm1662 = vweird.f32 %v112
    %v1663 = vadd.s32 %v1659, 3
    %v1664 = vand.u32 %v1663, 3
    %vm1665 = vcmp.lt.s32.totalorder %v1664, 2
    %vm1666 = vcmp.eq.s32.totalorder %v1664, 0
    %v1667 = vxor.u32 %v1661, 2147483648
    %v1668 = vsel %vm1666, %v1660, %v1667
    %vm1669 = vcmp.eq.s32.totalorder %v1664, 2
    %v1670 = vxor.u32 %v1660, 2147483648
    %v1671 = vsel %vm1669, %v1670, %v1661
    %v1672 = vsel %vm1665, %v1668, %v1671
    %v1673 = vsel %vm1662, nan, %v1672
    %v1674 = vand.u32 2147483647, %v113
    %vm1675 = vcmp.le.f32.partialorder %v1674, 0.7853982
    %vm1676 = vcmp.lt.s32.totalorder %v113, 0
    %v1677 = vand.u32 %v113, 2139095040
    %v1678 = vshrl.u32 %v1677, 23
    %v1679 = vsub.s32 %v1678, 127
    %v1680 = vand.u32 2147483647, %v113
    %v1681 = vand.u32 %v1680, 8388607
    %v1682 = vor.u32 %v1681, 8388608
    %v1683 = vsub.s32 0, %v1682
    %v1684 = vadd.s32 %v1679, 1
    %vm1685 = vcmp.gt.s32.totalorder %v1684, 0
    %v1686 = vsel %vm1685, %v1684, 0
    %v1687 = vshrl.u32 %v1686, 5
    %v1688 = vand.u32 %v1686, 31
    %v1689 = vsub.s32 32, %v1688
    %v1690 = vshrl.u32 683565275, %v1689
    %v1691 = vshll.u32 683565275, %v1688
    %v1692 = vshrl.u32 2475754826, %v1689
    %v1693 = vor.u32 %v1691, %v1692
    %v1694 = vshll.u32 2475754826, %v1688
    %v1695 = vshrl.u32 2131351028, %v1689
    %v1696 = vor.u32 %v1694, %v1695
    %v1697 = vshll.u32 2131351028, %v1688
    %v1698 = vshrl.u32 2102212464, %v1689
    %v1699 = vor.u32 %v1697, %v1698
    %v1700 = vshll.u32 2102212464, %v1688
    %v1701 = vshrl.u32 920167782, %v1689
    %v1702 = vor.u32 %v1700, %v1701
    %v1703 = vshll.u32 920167782, %v1688
    %v1704 = vshrl.u32 1326507024, %v1689
    %v1705 = vor.u32 %v1703, %v1704
    %vm1706 = vcmp.lt.s32.totalorder %v1687, 1
    %vm1707 = vcmp.lt.s32.totalorder %v1687, 2
    %vm1708 = vcmp.lt.s32.totalorder %v1687, 3
    %vm1709 = vcmp.lt.s32.totalorder %v1687, 4
    %v1710 = vsel %vm1706, %v1690, %v1693
    %v1711 = vsel %vm1709, %v1699, 2102212464
    %v1712 = vsel %vm1708, %v1696, %v1711
    %v1713 = vsel %vm1707, %v1710, %v1712
    %v1714 = vsel %vm1706, %v1693, %v1696
    %v1715 = vsel %vm1709, %v1702, 920167782
    %v1716 = vsel %vm1708, %v1699, %v1715
    %v1717 = vsel %vm1707, %v1714, %v1716
    %v1718 = vsel %vm1706, %v1696, %v1699
    %v1719 = vsel %vm1709, %v1705, 1326507024
    %v1720 = vsel %vm1708, %v1702, %v1719
    %v1721 = vsel %vm1707, %v1718, %v1720
    %v1722 = vshll.u32 %v1682, 8
    %v1723 = vmul.u32.u64.compose %v1722, %v1721
    %v1724 = vextract.low.u32 %v1723
    %v1725 = vextract.high.u32 %v1723
    %v1726 = vmul.u32.u64.compose %v1722, %v1717
    %v1727 = vextract.low.u32 %v1726
    %v1728 = vextract.high.u32 %v1726
    %v1729 = vmul.u32 %v1722, %v1713
    %v1730 = vadd.s32 %v1725, %v1727
    %vm1731 = vc.u32 %v1725, %v1727
    %v1732 = vadd.s32 %v1728, 1
    %v1733 = vsel %vm1731, %v1732, %v1728
    %v1734 = vadd.s32 %v1729, %v1733
    %v1735 = vadd.s32 %v1734, 536870912
    %v1736 = vshrl.u32 %v1735, 30
    %v1737 = vshll.u32 %v1736, 30
    %v1738 = vsub.s32 %v1734, %v1737
    %vm1739 = vcmp.lt.s32.totalorder %v1738, 0
    %v1740 = vsub.s32 0, %v1738
    %v1741 = vsel %vm1739, %v1740, %v1738
    %v1742 = vclz %v1741
    %v1743 = vsub.s32 %v1742, 2
    %vm1744 = vcmp.gt.s32.totalorder 0, %v1743
    %v1745 = vsel %vm1744, 0, %v1743
    %v1746 = vsub.s32 32, %v1745
    %v1747 = vshll.u32 %v1738, %v1745
    %v1748 = vshrl.u32 %v1730, %v1746
    %v1749 = vor.u32 %v1747, %v1748
    %v1750 = vsub.s32 4294967266, %v1745
    %v1751 = vadd.s32 %v1750, 127
    %v1752 = vshll.u32 %v1751, 23
    %v1753 = vor.u32 4788187, %v1752
    %v1754 = vand.u32 2147483647, %v1753
    %v1756 = vcvt.s32.f32 %v1749
    %v1757 = vmul.f32 %v1756, %v1754
    %v1758 = vxor.u32 %v1757, 2147483648
    %v1759 = vsel %vm1676, %v1758, %v1757
    %v1760 = vsub.s32 4, %v1736
    %v1761 = vsel %vm1676, %v1760, %v1736
    %v1762 = vsel %vm1675, %v113, %v1759
    %v1763 = vsel %vm1675, 0, %v1761
    %v1764 = vcosq.f32.pop %v1762
    %v1765 = vsinq.f32.pop %v1762
    %vm1766 = vweird.f32 %v113
    %v1767 = vadd.s32 %v1763, 3
    %v1768 = vand.u32 %v1767, 3
    %vm1769 = vcmp.lt.s32.totalorder %v1768, 2
    %vm1770 = vcmp.eq.s32.totalorder %v1768, 0
    %v1771 = vxor.u32 %v1765, 2147483648
    %v1772 = vsel %vm1770, %v1764, %v1771
    %vm1773 = vcmp.eq.s32.totalorder %v1768, 2
    %v1774 = vxor.u32 %v1764, 2147483648
    %v1775 = vsel %vm1773, %v1774, %v1765
    %v1776 = vsel %vm1769, %v1772, %v1775
    %v1777 = vsel %vm1766, nan, %v1776
    %1778 = vst [vmem:[#allocation5] sm:$0xff] %v217
    %1779 = vst [vmem:[#allocation5 + $0x8] sm:$0xff] %v321
    %1780 = vst [vmem:[#allocation5 + $0x10] sm:$0xff] %v425
    %1781 = vst [vmem:[#allocation5 + $0x18] sm:$0xff] %v529
    %1782 = vst [vmem:[#allocation5 + $0x20] sm:$0xff] %v633
    %1783 = vst [vmem:[#allocation5 + $0x28] sm:$0xff] %v737
    %1784 = vst [vmem:[#allocation5 + $0x30] sm:$0xff] %v841
    %1785 = vst [vmem:[#allocation5 + $0x38] sm:$0xff] %v945
    %1786 = vst [vmem:[#allocation5 + $0x40] sm:$0xff] %v1049
    %1787 = vst [vmem:[#allocation5 + $0x48] sm:$0xff] %v1153
    %1788 = vst [vmem:[#allocation5 + $0x50] sm:$0xff] %v1257
    %1789 = vst [vmem:[#allocation5 + $0x58] sm:$0xff] %v1361
    %1790 = vst [vmem:[#allocation5 + $0x60] sm:$0xff] %v1465
    %1791 = vst [vmem:[#allocation5 + $0x68] sm:$0xff] %v1569
    %1792 = vst [vmem:[#allocation5 + $0x70] sm:$0xff] %v1673
    %1793 = vst [vmem:[#allocation5 + $0x78] sm:$0xff] %v1777
    // Predicated region
    $region10: #{tpu_custom_call.1} parent=1 // pred_check
      _
    $region11: #{tpu_custom_call.1} parent=1 // pred_check_branch
      %1795 = sbr.rel (0) target = $region13
    $region12: #{tpu_custom_call.1} parent=1 // pred_region
      %s1797 = ssub.s32 2048, 2048
      %1798 = vsyncadd [#allocation4], %s1797
      %s1799 = sshll.u32 [#allocation5], 4
      %s1800 = int_to_ptr.vmem [resolvable:$true] %s1799
      %1805 = dma.vmem_to_hbm [thread:$0]  %s1800, 2048, %s1, [#allocation4], 128, 128, 8
    $region13: #{tpu_custom_call.1} parent=1 // pred_fallthru
      _
    // Predicated region
    $region14: #{tpu_custom_call.1} parent=1 // pred_check
      _
    $region15: #{tpu_custom_call.1} parent=1 // pred_check_branch
      %1807 = sbr.rel (0) target = $region17
    $region16: #{tpu_custom_call.1} parent=1 // pred_region
      %1808 = dma.done [#allocation4], 2048
    $region17: #{tpu_custom_call.1} parent=1 // pred_fallthru
      _
    %1809 = vsyncpa [#allocation3], 1
    %1810 = vsyncpa [#allocation4], 1

</llo_original>
